<compile_context>
chip_gen: v6e
topology: v6e:2x2x1
jax: 0.10.0
libtpu: 0.0.40
codegen_flags: <defaults>
</compile_context>

<pallas_src>
import functools
import jax
import jax.numpy as jnp
from jax.experimental import pallas as pl
from jax.experimental.pallas import tpu as pltpu


# ----------------------------- model constants -----------------------------

HIDDEN = 32
NUM_HEADS = 4
HEAD_DIM = HIDDEN // NUM_HEADS
FFN = 4 * HIDDEN
NUM_CLASSES = 7
NUM_CLASSES_PAD = 128          # lane-dense classifier output, sliced in wrapper
VOCAB = 64
MAX_LEN = 16
NUM_SEG = 2
LANES = 128

# weight-slab row offsets (bf16 slab, 128 lanes wide, every block starts at lane 0)
_W_Q, _W_K, _W_V, _W_O = 0, 32, 64, 96
_W_F1 = 128            # (32, 128)
_W_F2 = 160            # (128, 32)
_W_P = 288             # (32, 32)
_W_C = 320             # (32, 128)  (classifier, lane-padded from 7)
_W_ROWS = 352

# vector-slab indices (each vector lives on sublane row idx*8 of an f32 slab)
(_V_EG, _V_EB, _V_BQ, _V_BK, _V_BV, _V_BO,
 _V_G1, _V_B1, _V_BF1, _V_BF2, _V_G2, _V_B2, _V_BP, _V_BC) = range(14)
_V_ROWS = 14 * 8


# ----------------------------- fused Pallas kernel -----------------------------

def _fused_bert_kernel(h_ref, bias_ref, w_ref, v_ref, o_ref, *, B, L, nH, dH):
    H = nH * dH
    FF = 4 * H

    def vec(idx, width):
        r = idx * 8                                   # 8-row aligned single-row read
        return v_ref[r:r + 1, 0:width]                # (1, width) f32

    def layernorm(x, g_idx, b_idx):
        mean = jnp.mean(x, axis=-1, keepdims=True)
        xc = x - mean
        var = jnp.mean(xc * xc, axis=-1, keepdims=True)
        return xc * jax.lax.rsqrt(var + 1e-12) * vec(g_idx, H) + vec(b_idx, H)

    def mxu(x, w_bf16):
        # activations cast to bf16 per use; weights are already bf16; f32 accum.
        return jnp.dot(x.astype(jnp.bfloat16), w_bf16,
                       preferred_element_type=jnp.float32)

    # --- static weight views from the bf16 slab (one-time VMEM reads) ---
    wq = w_ref[_W_Q:_W_Q + H, 0:H]
    wk = w_ref[_W_K:_W_K + H, 0:H]
    wv = w_ref[_W_V:_W_V + H, 0:H]
    wo = w_ref[_W_O:_W_O + H, 0:H]
    wf1 = w_ref[_W_F1:_W_F1 + H, :]                   # (H, FF)
    wf2 = w_ref[_W_F2:_W_F2 + FF, 0:H]                # (FF, H)
    wp = w_ref[_W_P:_W_P + H, 0:H]
    wc = w_ref[_W_C:_W_C + H, :]                      # (H, 128)

    # --- embeddings layernorm ---
    h = layernorm(h_ref[...], _V_EG, _V_EB)           # (M, H) f32

    # --- Q / K / V as three wide (M,H)@(H,H) matmuls (results at lane offset 0) ---
    q = mxu(h, wq) + vec(_V_BQ, H)
    k = mxu(h, wk) + vec(_V_BV - 1, H) if False else mxu(h, wk) + vec(_V_BK, H)
    v = mxu(h, wv) + vec(_V_BV, H)

    bias = bias_ref[...]                               # (M, M) block-diag additive bias
    scale = 1.0 / (dH ** 0.5)

    # --- attention: batch dim handled by the block-diagonal bias, loop only over heads ---
    ctx_heads = []
    for hh in range(nH):
        c0 = hh * dH
        qh = q[:, c0:c0 + dH].astype(jnp.bfloat16)     # (M, dH)
        kh = k[:, c0:c0 + dH].astype(jnp.bfloat16)
        vh = v[:, c0:c0 + dH].astype(jnp.bfloat16)
        # scores over ALL rows at once: (M, dH) x (M, dH)^T -> (M, M)
        s = jax.lax.dot_general(qh, kh, (((1,), (1,)), ((), ())),
                                preferred_element_type=jnp.float32) * scale + bias
        s = s - jnp.max(s, axis=-1, keepdims=True)
        p = jnp.exp(s)
        p = p * pl.reciprocal(jnp.sum(p, axis=-1, keepdims=True), approx=True)
        ctx_heads.append(jnp.dot(p.astype(jnp.bfloat16), vh,
                                 preferred_element_type=jnp.float32))   # (M, dH)
    ctx = jnp.concatenate(ctx_heads, axis=-1)          # (M, H)

    # --- single output projection matmul (no per-head folding) ---
    attn_out = mxu(ctx, wo) + vec(_V_BO, H)
    h = layernorm(attn_out + h, _V_G1, _V_B1)

    # --- feed-forward ---
    ff = mxu(h, wf1) + vec(_V_BF1, FF)
    ff = jax.nn.gelu(ff, approximate=True)
    ff = mxu(ff, wf2) + vec(_V_BF2, H)
    h = layernorm(ff + h, _V_G2, _V_B2)

    # --- pooler (tanh on CLS token) + dropout(eval == identity) + classifier ---
    cls = jnp.concatenate([h[b * L:b * L + 1, :] for b in range(B)], axis=0)  # (B, H)
    pooled = jnp.tanh(mxu(cls, wp) + vec(_V_BP, H))
    o_ref[...] = mxu(pooled, wc) + vec(_V_BC, NUM_CLASSES_PAD)                # (B, 128)


def fused_bert_forward(h_emb, bias_mat, wslab, vslab, B, L):
    kernel = functools.partial(_fused_bert_kernel, B=B, L=L,
                               nH=NUM_HEADS, dH=HEAD_DIM)
    vmem = lambda: pl.BlockSpec(memory_space=pltpu.MemorySpace.VMEM)
    logits_pad = pl.pallas_call(
        kernel,
        out_shape=jax.ShapeDtypeStruct((B, NUM_CLASSES_PAD), jnp.float32),
        in_specs=[vmem(), vmem(), vmem(), vmem()],
        out_specs=vmem(),
    )(h_emb, bias_mat, wslab, vslab)
    return logits_pad[:, :NUM_CLASSES]


# ----------------------------- parameter packing -----------------------------

def init_params(key):
    ks = jax.random.split(key, 16)
    w = lambda k, s: jax.random.normal(k, s, jnp.float32) * 0.02
    return {
        "word_emb": w(ks[0], (VOCAB, HIDDEN)),
        "pos_emb": w(ks[1], (MAX_LEN, HIDDEN)),
        "seg_emb": w(ks[2], (NUM_SEG, HIDDEN)),
        "emb_ln_g": jnp.ones((HIDDEN,), jnp.float32),
        "emb_ln_b": jnp.zeros((HIDDEN,), jnp.float32),
        "wq": w(ks[3], (HIDDEN, HIDDEN)), "bq": jnp.zeros((HIDDEN,), jnp.float32),
        "wk": w(ks[4], (HIDDEN, HIDDEN)), "bk": jnp.zeros((HIDDEN,), jnp.float32),
        "wv": w(ks[5], (HIDDEN, HIDDEN)), "bv": jnp.zeros((HIDDEN,), jnp.float32),
        "wo": w(ks[6], (HIDDEN, HIDDEN)), "bo": jnp.zeros((HIDDEN,), jnp.float32),
        "ln1_g": jnp.ones((HIDDEN,), jnp.float32), "ln1_b": jnp.zeros((HIDDEN,), jnp.float32),
        "w_ff1": w(ks[7], (HIDDEN, FFN)), "b_ff1": jnp.zeros((FFN,), jnp.float32),
        "w_ff2": w(ks[8], (FFN, HIDDEN)), "b_ff2": jnp.zeros((HIDDEN,), jnp.float32),
        "ln2_g": jnp.ones((HIDDEN,), jnp.float32), "ln2_b": jnp.zeros((HIDDEN,), jnp.float32),
        "w_pool": w(ks[9], (HIDDEN, HIDDEN)), "b_pool": jnp.zeros((HIDDEN,), jnp.float32),
        "w_cls": w(ks[10], (HIDDEN, NUM_CLASSES)), "b_cls": jnp.zeros((NUM_CLASSES,), jnp.float32),
    }


def pack_params(p):
    """One-time packing (outside the jitted per-call path): bf16 weight slab + f32 vector slab."""
    def wpad(x):  # pad columns to 128 lanes, cast to bf16
        return jnp.pad(x, ((0, 0), (0, LANES - x.shape[1]))).astype(jnp.bfloat16)

    wslab = jnp.concatenate([
        wpad(p["wq"]), wpad(p["wk"]), wpad(p["wv"]), wpad(p["wo"]),
        wpad(p["w_ff1"]), wpad(p["w_ff2"]), wpad(p["w_pool"]), wpad(p["w_cls"]),
    ], axis=0)
    assert wslab.shape == (_W_ROWS, LANES)

    def vblock(x):  # one vector per 8-row (sublane-aligned) block, lane-padded to 128
        row = jnp.pad(x.astype(jnp.float32), (0, LANES - x.shape[0])).reshape(1, LANES)
        return jnp.concatenate([row, jnp.zeros((7, LANES), jnp.float32)], axis=0)

    vslab = jnp.concatenate([vblock(v) for v in (
        p["emb_ln_g"], p["emb_ln_b"],
        p["bq"], p["bk"], p["bv"], p["bo"],
        p["ln1_g"], p["ln1_b"],
        p["b_ff1"], p["b_ff2"],
        p["ln2_g"], p["ln2_b"],
        p["b_pool"], p["b_cls"],
    )], axis=0)
    assert vslab.shape == (_V_ROWS, LANES)

    return {"wslab": wslab, "vslab": vslab,
            "word_emb": p["word_emb"], "pos_emb": p["pos_emb"], "seg_emb": p["seg_emb"]}


# ----------------------------- model wrapper -----------------------------

def gen_attention_mask(token_ids, valid_length):
    # Faithfully reproduce the PyTorch loop-with-early-return: only row 0 is set.
    B, L = token_ids.shape
    row0 = (jnp.arange(L) < valid_length[0]).astype(jnp.float32)
    mask = jnp.zeros((B, L), jnp.float32)
    return mask.at[0].set(row0)


def bert_classifier_forward(packed, token_ids, valid_length, segment_ids, dr_rate=0.5):
    B, L = token_ids.shape
    M = B * L

    attention_mask = gen_attention_mask(token_ids, valid_length)
    attn_bias = (1.0 - attention_mask) * (-10000.0)                # (B, L) additive

    # Block-diagonal (M, M) bias: per-batch additive mask on the diagonal blocks,
    # -1e9 on cross-batch blocks so one softmax over all M columns == per-batch softmax.
    batch_id = jnp.repeat(jnp.arange(B), L)
    same_batch = batch_id[:, None] == batch_id[None, :]
    bias_mat = jnp.where(same_batch,
                         jnp.broadcast_to(attn_bias.reshape(1, M), (M, M)),
                         jnp.float32(-1e9))

    # embeddings (gather is plain-JAX glue)
    h = (packed["word_emb"][token_ids]
         + packed["seg_emb"][segment_ids]
         + packed["pos_emb"][:L][None, :, :]).reshape(M, HIDDEN).astype(jnp.float32)

    logits = fused_bert_forward(h, bias_mat, packed["wslab"], packed["vslab"], B, L)
    if dr_rate:
        # dropout(p=dr_rate) in eval mode == identity
        return logits
    # Matches the PyTorch module: returns None when dr_rate is falsy.
    return None


# --------------------------------- main ----------------------------------

if __name__ == "__main__":
    key = jax.random.PRNGKey(0)
    k_param, k_tok, k_seg = jax.random.split(key, 3)

    B, L = 2, 8
    params = init_params(k_param)
    packed = pack_params(params)          # one-time slab packing / bf16 cast (not per call)

    token_ids = jax.random.randint(k_tok, (B, L), 0, VOCAB, dtype=jnp.int32)
    segment_ids = jax.random.randint(k_seg, (B, L), 0, NUM_SEG, dtype=jnp.int32)
    valid_length = jnp.array([5, 7], dtype=jnp.int32)

    forward = jax.jit(functools.partial(bert_classifier_forward, dr_rate=0.5))
    logits = forward(packed, token_ids, valid_length, segment_ids)
    logits = jax.block_until_ready(logits)
    assert logits.shape == (B, NUM_CLASSES) and logits.dtype == jnp.float32
    print("KERNEL_OK")
</pallas_src>

<mosaic_0001>
module attributes {stable_mosaic.version = 11 : i64} {
  func.func @_fused_bert_kernel(%arg0: memref<16x32xf32, #tpu.memory_space<vmem>>, %arg1: memref<16x16xf32, #tpu.memory_space<vmem>>, %arg2: memref<352x128xbf16, #tpu.memory_space<vmem>>, %arg3: memref<112x128xf32, #tpu.memory_space<vmem>>, %arg4: memref<2x128xf32, #tpu.memory_space<vmem>>) attributes {dimension_semantics = [], scalar_prefetch = 0 : i64, scratch_operands = 0 : i64, tpu.core_type = #tpu.core_type<tc>} {
    %c0 = arith.constant 0 : index
    %c0_0 = arith.constant 0 : index
    %0 = vector.load %arg2[%c0, %c0_0] : memref<352x128xbf16, #tpu.memory_space<vmem>>, vector<32x32xbf16>
    %c32 = arith.constant 32 : index
    %c0_1 = arith.constant 0 : index
    %1 = vector.load %arg2[%c32, %c0_1] : memref<352x128xbf16, #tpu.memory_space<vmem>>, vector<32x32xbf16>
    %c64 = arith.constant 64 : index
    %c0_2 = arith.constant 0 : index
    %2 = vector.load %arg2[%c64, %c0_2] : memref<352x128xbf16, #tpu.memory_space<vmem>>, vector<32x32xbf16>
    %c96 = arith.constant 96 : index
    %c0_3 = arith.constant 0 : index
    %3 = vector.load %arg2[%c96, %c0_3] : memref<352x128xbf16, #tpu.memory_space<vmem>>, vector<32x32xbf16>
    %c128 = arith.constant 128 : index
    %c0_4 = arith.constant 0 : index
    %4 = vector.load %arg2[%c128, %c0_4] : memref<352x128xbf16, #tpu.memory_space<vmem>>, vector<32x128xbf16>
    %c160 = arith.constant 160 : index
    %c0_5 = arith.constant 0 : index
    %5 = vector.load %arg2[%c160, %c0_5] : memref<352x128xbf16, #tpu.memory_space<vmem>>, vector<128x32xbf16>
    %c288 = arith.constant 288 : index
    %c0_6 = arith.constant 0 : index
    %6 = vector.load %arg2[%c288, %c0_6] : memref<352x128xbf16, #tpu.memory_space<vmem>>, vector<32x32xbf16>
    %c320 = arith.constant 320 : index
    %c0_7 = arith.constant 0 : index
    %7 = vector.load %arg2[%c320, %c0_7] : memref<352x128xbf16, #tpu.memory_space<vmem>>, vector<32x128xbf16>
    %c0_8 = arith.constant 0 : index
    %c0_9 = arith.constant 0 : index
    %8 = vector.load %arg0[%c0_8, %c0_9] : memref<16x32xf32, #tpu.memory_space<vmem>>, vector<16x32xf32>
    %cst = arith.constant dense<0.000000e+00> : vector<16xf32>
    %9 = vector.multi_reduction <add>, %8, %cst [1] : vector<16x32xf32> to vector<16xf32>
    %10 = vector.shape_cast %9 : vector<16xf32> to vector<16x1xf32>
    %cst_10 = arith.constant 3.200000e+01 : f32
    %11 = vector.broadcast %cst_10 : f32 to vector<16x1xf32>
    %12 = arith.divf %10, %11 : vector<16x1xf32>
    %13 = vector.broadcast %12 : vector<16x1xf32> to vector<16x32xf32>
    %14 = arith.subf %8, %13 : vector<16x32xf32>
    %15 = arith.mulf %14, %14 : vector<16x32xf32>
    %cst_11 = arith.constant dense<0.000000e+00> : vector<16xf32>
    %16 = vector.multi_reduction <add>, %15, %cst_11 [1] : vector<16x32xf32> to vector<16xf32>
    %17 = vector.shape_cast %16 : vector<16xf32> to vector<16x1xf32>
    %cst_12 = arith.constant 3.200000e+01 : f32
    %18 = vector.broadcast %cst_12 : f32 to vector<16x1xf32>
    %19 = arith.divf %17, %18 : vector<16x1xf32>
    %cst_13 = arith.constant 9.99999996E-13 : f32
    %20 = vector.broadcast %cst_13 : f32 to vector<16x1xf32>
    %21 = arith.addf %19, %20 : vector<16x1xf32>
    %22 = math.rsqrt %21 : vector<16x1xf32>
    %23 = vector.broadcast %22 : vector<16x1xf32> to vector<16x32xf32>
    %24 = arith.mulf %14, %23 : vector<16x32xf32>
    %c0_14 = arith.constant 0 : index
    %c0_15 = arith.constant 0 : index
    %25 = vector.load %arg3[%c0_14, %c0_15] : memref<112x128xf32, #tpu.memory_space<vmem>>, vector<1x32xf32>
    %26 = vector.broadcast %25 : vector<1x32xf32> to vector<16x32xf32>
    %27 = arith.mulf %24, %26 : vector<16x32xf32>
    %c8 = arith.constant 8 : index
    %c0_16 = arith.constant 0 : index
    %28 = vector.load %arg3[%c8, %c0_16] : memref<112x128xf32, #tpu.memory_space<vmem>>, vector<1x32xf32>
    %29 = vector.broadcast %28 : vector<1x32xf32> to vector<16x32xf32>
    %30 = arith.addf %27, %29 : vector<16x32xf32>
    %31 = arith.truncf %30 : vector<16x32xf32> to vector<16x32xbf16>
    %cst_17 = arith.constant dense<0.000000e+00> : vector<16x32xf32>
    %32 = tpu.matmul %31, %0, %cst_17 {dimension_numbers = #tpu.dot_dimension_numbers<[1], [0], [0], [1], [0, 0, 1, 1], [], []>} : vector<16x32xbf16>, vector<32x32xbf16>, vector<16x32xf32> -> vector<16x32xf32>
    %c16 = arith.constant 16 : index
    %c0_18 = arith.constant 0 : index
    %33 = vector.load %arg3[%c16, %c0_18] : memref<112x128xf32, #tpu.memory_space<vmem>>, vector<1x32xf32>
    %34 = vector.broadcast %33 : vector<1x32xf32> to vector<16x32xf32>
    %35 = arith.addf %32, %34 : vector<16x32xf32>
    %36 = arith.truncf %30 : vector<16x32xf32> to vector<16x32xbf16>
    %cst_19 = arith.constant dense<0.000000e+00> : vector<16x32xf32>
    %37 = tpu.matmul %36, %1, %cst_19 {dimension_numbers = #tpu.dot_dimension_numbers<[1], [0], [0], [1], [0, 0, 1, 1], [], []>} : vector<16x32xbf16>, vector<32x32xbf16>, vector<16x32xf32> -> vector<16x32xf32>
    %c24 = arith.constant 24 : index
    %c0_20 = arith.constant 0 : index
    %38 = vector.load %arg3[%c24, %c0_20] : memref<112x128xf32, #tpu.memory_space<vmem>>, vector<1x32xf32>
    %39 = vector.broadcast %38 : vector<1x32xf32> to vector<16x32xf32>
    %40 = arith.addf %37, %39 : vector<16x32xf32>
    %41 = arith.truncf %30 : vector<16x32xf32> to vector<16x32xbf16>
    %cst_21 = arith.constant dense<0.000000e+00> : vector<16x32xf32>
    %42 = tpu.matmul %41, %2, %cst_21 {dimension_numbers = #tpu.dot_dimension_numbers<[1], [0], [0], [1], [0, 0, 1, 1], [], []>} : vector<16x32xbf16>, vector<32x32xbf16>, vector<16x32xf32> -> vector<16x32xf32>
    %c32_22 = arith.constant 32 : index
    %c0_23 = arith.constant 0 : index
    %43 = vector.load %arg3[%c32_22, %c0_23] : memref<112x128xf32, #tpu.memory_space<vmem>>, vector<1x32xf32>
    %44 = vector.broadcast %43 : vector<1x32xf32> to vector<16x32xf32>
    %45 = arith.addf %42, %44 : vector<16x32xf32>
    %c0_24 = arith.constant 0 : index
    %c0_25 = arith.constant 0 : index
    %46 = vector.load %arg1[%c0_24, %c0_25] : memref<16x16xf32, #tpu.memory_space<vmem>>, vector<16x16xf32>
    %47 = vector.extract_strided_slice %35 {offsets = [0, 0], sizes = [16, 8], strides = [1, 1]} : vector<16x32xf32> to vector<16x8xf32>
    %48 = arith.truncf %47 : vector<16x8xf32> to vector<16x8xbf16>
    %49 = vector.extract_strided_slice %40 {offsets = [0, 0], sizes = [16, 8], strides = [1, 1]} : vector<16x32xf32> to vector<16x8xf32>
    %50 = arith.truncf %49 : vector<16x8xf32> to vector<16x8xbf16>
    %51 = vector.extract_strided_slice %45 {offsets = [0, 0], sizes = [16, 8], strides = [1, 1]} : vector<16x32xf32> to vector<16x8xf32>
    %52 = arith.truncf %51 : vector<16x8xf32> to vector<16x8xbf16>
    %cst_26 = arith.constant dense<0.000000e+00> : vector<16x16xf32>
    %53 = tpu.matmul %48, %50, %cst_26 {dimension_numbers = #tpu.dot_dimension_numbers<[1], [1], [0], [0], [0, 0, 1, 0], [], []>} : vector<16x8xbf16>, vector<16x8xbf16>, vector<16x16xf32> -> vector<16x16xf32>
    %cst_27 = arith.constant 0.353553385 : f32
    %54 = vector.broadcast %cst_27 : f32 to vector<16x16xf32>
    %55 = arith.mulf %53, %54 : vector<16x16xf32>
    %56 = arith.addf %55, %46 : vector<16x16xf32>
    %cst_28 = arith.constant dense<0xFF800000> : vector<16xf32>
    %57 = vector.multi_reduction <maximumf>, %56, %cst_28 [1] : vector<16x16xf32> to vector<16xf32>
    %58 = vector.shape_cast %57 : vector<16xf32> to vector<16x1xf32>
    %59 = vector.broadcast %58 : vector<16x1xf32> to vector<16x16xf32>
    %60 = arith.subf %56, %59 : vector<16x16xf32>
    %61 = math.exp %60 : vector<16x16xf32>
    %cst_29 = arith.constant dense<0.000000e+00> : vector<16xf32>
    %62 = vector.multi_reduction <add>, %61, %cst_29 [1] : vector<16x16xf32> to vector<16xf32>
    %63 = vector.shape_cast %62 : vector<16xf32> to vector<16x1xf32>
    %64 = tpu.reciprocal %63 {approx = true} : vector<16x1xf32> -> vector<16x1xf32>
    %65 = vector.broadcast %64 : vector<16x1xf32> to vector<16x16xf32>
    %66 = arith.mulf %61, %65 : vector<16x16xf32>
    %67 = arith.truncf %66 : vector<16x16xf32> to vector<16x16xbf16>
    %cst_30 = arith.constant dense<0.000000e+00> : vector<16x8xf32>
    %68 = tpu.matmul %67, %52, %cst_30 {dimension_numbers = #tpu.dot_dimension_numbers<[1], [0], [0], [1], [0, 0, 1, 1], [], []>} : vector<16x16xbf16>, vector<16x8xbf16>, vector<16x8xf32> -> vector<16x8xf32>
    %69 = vector.extract_strided_slice %35 {offsets = [0, 8], sizes = [16, 8], strides = [1, 1]} : vector<16x32xf32> to vector<16x8xf32>
    %70 = arith.truncf %69 : vector<16x8xf32> to vector<16x8xbf16>
    %71 = vector.extract_strided_slice %40 {offsets = [0, 8], sizes = [16, 8], strides = [1, 1]} : vector<16x32xf32> to vector<16x8xf32>
    %72 = arith.truncf %71 : vector<16x8xf32> to vector<16x8xbf16>
    %73 = vector.extract_strided_slice %45 {offsets = [0, 8], sizes = [16, 8], strides = [1, 1]} : vector<16x32xf32> to vector<16x8xf32>
    %74 = arith.truncf %73 : vector<16x8xf32> to vector<16x8xbf16>
    %cst_31 = arith.constant dense<0.000000e+00> : vector<16x16xf32>
    %75 = tpu.matmul %70, %72, %cst_31 {dimension_numbers = #tpu.dot_dimension_numbers<[1], [1], [0], [0], [0, 0, 1, 0], [], []>} : vector<16x8xbf16>, vector<16x8xbf16>, vector<16x16xf32> -> vector<16x16xf32>
    %cst_32 = arith.constant 0.353553385 : f32
    %76 = vector.broadcast %cst_32 : f32 to vector<16x16xf32>
    %77 = arith.mulf %75, %76 : vector<16x16xf32>
    %78 = arith.addf %77, %46 : vector<16x16xf32>
    %cst_33 = arith.constant dense<0xFF800000> : vector<16xf32>
    %79 = vector.multi_reduction <maximumf>, %78, %cst_33 [1] : vector<16x16xf32> to vector<16xf32>
    %80 = vector.shape_cast %79 : vector<16xf32> to vector<16x1xf32>
    %81 = vector.broadcast %80 : vector<16x1xf32> to vector<16x16xf32>
    %82 = arith.subf %78, %81 : vector<16x16xf32>
    %83 = math.exp %82 : vector<16x16xf32>
    %cst_34 = arith.constant dense<0.000000e+00> : vector<16xf32>
    %84 = vector.multi_reduction <add>, %83, %cst_34 [1] : vector<16x16xf32> to vector<16xf32>
    %85 = vector.shape_cast %84 : vector<16xf32> to vector<16x1xf32>
    %86 = tpu.reciprocal %85 {approx = true} : vector<16x1xf32> -> vector<16x1xf32>
    %87 = vector.broadcast %86 : vector<16x1xf32> to vector<16x16xf32>
    %88 = arith.mulf %83, %87 : vector<16x16xf32>
    %89 = arith.truncf %88 : vector<16x16xf32> to vector<16x16xbf16>
    %cst_35 = arith.constant dense<0.000000e+00> : vector<16x8xf32>
    %90 = tpu.matmul %89, %74, %cst_35 {dimension_numbers = #tpu.dot_dimension_numbers<[1], [0], [0], [1], [0, 0, 1, 1], [], []>} : vector<16x16xbf16>, vector<16x8xbf16>, vector<16x8xf32> -> vector<16x8xf32>
    %91 = vector.extract_strided_slice %35 {offsets = [0, 16], sizes = [16, 8], strides = [1, 1]} : vector<16x32xf32> to vector<16x8xf32>
    %92 = arith.truncf %91 : vector<16x8xf32> to vector<16x8xbf16>
    %93 = vector.extract_strided_slice %40 {offsets = [0, 16], sizes = [16, 8], strides = [1, 1]} : vector<16x32xf32> to vector<16x8xf32>
    %94 = arith.truncf %93 : vector<16x8xf32> to vector<16x8xbf16>
    %95 = vector.extract_strided_slice %45 {offsets = [0, 16], sizes = [16, 8], strides = [1, 1]} : vector<16x32xf32> to vector<16x8xf32>
    %96 = arith.truncf %95 : vector<16x8xf32> to vector<16x8xbf16>
    %cst_36 = arith.constant dense<0.000000e+00> : vector<16x16xf32>
    %97 = tpu.matmul %92, %94, %cst_36 {dimension_numbers = #tpu.dot_dimension_numbers<[1], [1], [0], [0], [0, 0, 1, 0], [], []>} : vector<16x8xbf16>, vector<16x8xbf16>, vector<16x16xf32> -> vector<16x16xf32>
    %cst_37 = arith.constant 0.353553385 : f32
    %98 = vector.broadcast %cst_37 : f32 to vector<16x16xf32>
    %99 = arith.mulf %97, %98 : vector<16x16xf32>
    %100 = arith.addf %99, %46 : vector<16x16xf32>
    %cst_38 = arith.constant dense<0xFF800000> : vector<16xf32>
    %101 = vector.multi_reduction <maximumf>, %100, %cst_38 [1] : vector<16x16xf32> to vector<16xf32>
    %102 = vector.shape_cast %101 : vector<16xf32> to vector<16x1xf32>
    %103 = vector.broadcast %102 : vector<16x1xf32> to vector<16x16xf32>
    %104 = arith.subf %100, %103 : vector<16x16xf32>
    %105 = math.exp %104 : vector<16x16xf32>
    %cst_39 = arith.constant dense<0.000000e+00> : vector<16xf32>
    %106 = vector.multi_reduction <add>, %105, %cst_39 [1] : vector<16x16xf32> to vector<16xf32>
    %107 = vector.shape_cast %106 : vector<16xf32> to vector<16x1xf32>
    %108 = tpu.reciprocal %107 {approx = true} : vector<16x1xf32> -> vector<16x1xf32>
    %109 = vector.broadcast %108 : vector<16x1xf32> to vector<16x16xf32>
    %110 = arith.mulf %105, %109 : vector<16x16xf32>
    %111 = arith.truncf %110 : vector<16x16xf32> to vector<16x16xbf16>
    %cst_40 = arith.constant dense<0.000000e+00> : vector<16x8xf32>
    %112 = tpu.matmul %111, %96, %cst_40 {dimension_numbers = #tpu.dot_dimension_numbers<[1], [0], [0], [1], [0, 0, 1, 1], [], []>} : vector<16x16xbf16>, vector<16x8xbf16>, vector<16x8xf32> -> vector<16x8xf32>
    %113 = vector.extract_strided_slice %35 {offsets = [0, 24], sizes = [16, 8], strides = [1, 1]} : vector<16x32xf32> to vector<16x8xf32>
    %114 = arith.truncf %113 : vector<16x8xf32> to vector<16x8xbf16>
    %115 = vector.extract_strided_slice %40 {offsets = [0, 24], sizes = [16, 8], strides = [1, 1]} : vector<16x32xf32> to vector<16x8xf32>
    %116 = arith.truncf %115 : vector<16x8xf32> to vector<16x8xbf16>
    %117 = vector.extract_strided_slice %45 {offsets = [0, 24], sizes = [16, 8], strides = [1, 1]} : vector<16x32xf32> to vector<16x8xf32>
    %118 = arith.truncf %117 : vector<16x8xf32> to vector<16x8xbf16>
    %cst_41 = arith.constant dense<0.000000e+00> : vector<16x16xf32>
    %119 = tpu.matmul %114, %116, %cst_41 {dimension_numbers = #tpu.dot_dimension_numbers<[1], [1], [0], [0], [0, 0, 1, 0], [], []>} : vector<16x8xbf16>, vector<16x8xbf16>, vector<16x16xf32> -> vector<16x16xf32>
    %cst_42 = arith.constant 0.353553385 : f32
    %120 = vector.broadcast %cst_42 : f32 to vector<16x16xf32>
    %121 = arith.mulf %119, %120 : vector<16x16xf32>
    %122 = arith.addf %121, %46 : vector<16x16xf32>
    %cst_43 = arith.constant dense<0xFF800000> : vector<16xf32>
    %123 = vector.multi_reduction <maximumf>, %122, %cst_43 [1] : vector<16x16xf32> to vector<16xf32>
    %124 = vector.shape_cast %123 : vector<16xf32> to vector<16x1xf32>
    %125 = vector.broadcast %124 : vector<16x1xf32> to vector<16x16xf32>
    %126 = arith.subf %122, %125 : vector<16x16xf32>
    %127 = math.exp %126 : vector<16x16xf32>
    %cst_44 = arith.constant dense<0.000000e+00> : vector<16xf32>
    %128 = vector.multi_reduction <add>, %127, %cst_44 [1] : vector<16x16xf32> to vector<16xf32>
    %129 = vector.shape_cast %128 : vector<16xf32> to vector<16x1xf32>
    %130 = tpu.reciprocal %129 {approx = true} : vector<16x1xf32> -> vector<16x1xf32>
    %131 = vector.broadcast %130 : vector<16x1xf32> to vector<16x16xf32>
    %132 = arith.mulf %127, %131 : vector<16x16xf32>
    %133 = arith.truncf %132 : vector<16x16xf32> to vector<16x16xbf16>
    %cst_45 = arith.constant dense<0.000000e+00> : vector<16x8xf32>
    %134 = tpu.matmul %133, %118, %cst_45 {dimension_numbers = #tpu.dot_dimension_numbers<[1], [0], [0], [1], [0, 0, 1, 1], [], []>} : vector<16x16xbf16>, vector<16x8xbf16>, vector<16x8xf32> -> vector<16x8xf32>
    %135 = tpu.concatenate %68, %90, %112, %134 in 1 : vector<16x8xf32>, vector<16x8xf32>, vector<16x8xf32>, vector<16x8xf32> -> vector<16x32xf32>
    %136 = arith.truncf %135 : vector<16x32xf32> to vector<16x32xbf16>
    %cst_46 = arith.constant dense<0.000000e+00> : vector<16x32xf32>
    %137 = tpu.matmul %136, %3, %cst_46 {dimension_numbers = #tpu.dot_dimension_numbers<[1], [0], [0], [1], [0, 0, 1, 1], [], []>} : vector<16x32xbf16>, vector<32x32xbf16>, vector<16x32xf32> -> vector<16x32xf32>
    %c40 = arith.constant 40 : index
    %c0_47 = arith.constant 0 : index
    %138 = vector.load %arg3[%c40, %c0_47] : memref<112x128xf32, #tpu.memory_space<vmem>>, vector<1x32xf32>
    %139 = vector.broadcast %138 : vector<1x32xf32> to vector<16x32xf32>
    %140 = arith.addf %137, %139 : vector<16x32xf32>
    %141 = arith.addf %140, %30 : vector<16x32xf32>
    %cst_48 = arith.constant dense<0.000000e+00> : vector<16xf32>
    %142 = vector.multi_reduction <add>, %141, %cst_48 [1] : vector<16x32xf32> to vector<16xf32>
    %143 = vector.shape_cast %142 : vector<16xf32> to vector<16x1xf32>
    %cst_49 = arith.constant 3.200000e+01 : f32
    %144 = vector.broadcast %cst_49 : f32 to vector<16x1xf32>
    %145 = arith.divf %143, %144 : vector<16x1xf32>
    %146 = vector.broadcast %145 : vector<16x1xf32> to vector<16x32xf32>
    %147 = arith.subf %141, %146 : vector<16x32xf32>
    %148 = arith.mulf %147, %147 : vector<16x32xf32>
    %cst_50 = arith.constant dense<0.000000e+00> : vector<16xf32>
    %149 = vector.multi_reduction <add>, %148, %cst_50 [1] : vector<16x32xf32> to vector<16xf32>
    %150 = vector.shape_cast %149 : vector<16xf32> to vector<16x1xf32>
    %cst_51 = arith.constant 3.200000e+01 : f32
    %151 = vector.broadcast %cst_51 : f32 to vector<16x1xf32>
    %152 = arith.divf %150, %151 : vector<16x1xf32>
    %cst_52 = arith.constant 9.99999996E-13 : f32
    %153 = vector.broadcast %cst_52 : f32 to vector<16x1xf32>
    %154 = arith.addf %152, %153 : vector<16x1xf32>
    %155 = math.rsqrt %154 : vector<16x1xf32>
    %156 = vector.broadcast %155 : vector<16x1xf32> to vector<16x32xf32>
    %157 = arith.mulf %147, %156 : vector<16x32xf32>
    %c48 = arith.constant 48 : index
    %c0_53 = arith.constant 0 : index
    %158 = vector.load %arg3[%c48, %c0_53] : memref<112x128xf32, #tpu.memory_space<vmem>>, vector<1x32xf32>
    %159 = vector.broadcast %158 : vector<1x32xf32> to vector<16x32xf32>
    %160 = arith.mulf %157, %159 : vector<16x32xf32>
    %c56 = arith.constant 56 : index
    %c0_54 = arith.constant 0 : index
    %161 = vector.load %arg3[%c56, %c0_54] : memref<112x128xf32, #tpu.memory_space<vmem>>, vector<1x32xf32>
    %162 = vector.broadcast %161 : vector<1x32xf32> to vector<16x32xf32>
    %163 = arith.addf %160, %162 : vector<16x32xf32>
    %164 = arith.truncf %163 : vector<16x32xf32> to vector<16x32xbf16>
    %cst_55 = arith.constant dense<0.000000e+00> : vector<16x128xf32>
    %165 = tpu.matmul %164, %4, %cst_55 {dimension_numbers = #tpu.dot_dimension_numbers<[1], [0], [0], [1], [0, 0, 1, 1], [], []>} : vector<16x32xbf16>, vector<32x128xbf16>, vector<16x128xf32> -> vector<16x128xf32>
    %c64_56 = arith.constant 64 : index
    %c0_57 = arith.constant 0 : index
    %166 = vector.load %arg3[%c64_56, %c0_57] : memref<112x128xf32, #tpu.memory_space<vmem>>, vector<1x128xf32>
    %167 = vector.broadcast %166 : vector<1x128xf32> to vector<16x128xf32>
    %168 = arith.addf %165, %167 : vector<16x128xf32>
    %169 = arith.mulf %168, %168 : vector<16x128xf32>
    %170 = arith.mulf %168, %169 : vector<16x128xf32>
    %cst_58 = arith.constant 4.471500e-02 : f32
    %171 = vector.broadcast %cst_58 : f32 to vector<16x128xf32>
    %172 = arith.mulf %171, %170 : vector<16x128xf32>
    %173 = arith.addf %168, %172 : vector<16x128xf32>
    %cst_59 = arith.constant 0.797884583 : f32
    %174 = vector.broadcast %cst_59 : f32 to vector<16x128xf32>
    %175 = arith.mulf %174, %173 : vector<16x128xf32>
    %176 = math.tanh %175 : vector<16x128xf32>
    %cst_60 = arith.constant 1.000000e+00 : f32
    %177 = vector.broadcast %cst_60 : f32 to vector<16x128xf32>
    %178 = arith.addf %177, %176 : vector<16x128xf32>
    %cst_61 = arith.constant 5.000000e-01 : f32
    %179 = vector.broadcast %cst_61 : f32 to vector<16x128xf32>
    %180 = arith.mulf %179, %178 : vector<16x128xf32>
    %181 = arith.mulf %168, %180 : vector<16x128xf32>
    %182 = arith.truncf %181 : vector<16x128xf32> to vector<16x128xbf16>
    %cst_62 = arith.constant dense<0.000000e+00> : vector<16x32xf32>
    %183 = tpu.matmul %182, %5, %cst_62 {dimension_numbers = #tpu.dot_dimension_numbers<[1], [0], [0], [1], [0, 0, 1, 1], [], []>} : vector<16x128xbf16>, vector<128x32xbf16>, vector<16x32xf32> -> vector<16x32xf32>
    %c72 = arith.constant 72 : index
    %c0_63 = arith.constant 0 : index
    %184 = vector.load %arg3[%c72, %c0_63] : memref<112x128xf32, #tpu.memory_space<vmem>>, vector<1x32xf32>
    %185 = vector.broadcast %184 : vector<1x32xf32> to vector<16x32xf32>
    %186 = arith.addf %183, %185 : vector<16x32xf32>
    %187 = arith.addf %186, %163 : vector<16x32xf32>
    %cst_64 = arith.constant dense<0.000000e+00> : vector<16xf32>
    %188 = vector.multi_reduction <add>, %187, %cst_64 [1] : vector<16x32xf32> to vector<16xf32>
    %189 = vector.shape_cast %188 : vector<16xf32> to vector<16x1xf32>
    %cst_65 = arith.constant 3.200000e+01 : f32
    %190 = vector.broadcast %cst_65 : f32 to vector<16x1xf32>
    %191 = arith.divf %189, %190 : vector<16x1xf32>
    %192 = vector.broadcast %191 : vector<16x1xf32> to vector<16x32xf32>
    %193 = arith.subf %187, %192 : vector<16x32xf32>
    %194 = arith.mulf %193, %193 : vector<16x32xf32>
    %cst_66 = arith.constant dense<0.000000e+00> : vector<16xf32>
    %195 = vector.multi_reduction <add>, %194, %cst_66 [1] : vector<16x32xf32> to vector<16xf32>
    %196 = vector.shape_cast %195 : vector<16xf32> to vector<16x1xf32>
    %cst_67 = arith.constant 3.200000e+01 : f32
    %197 = vector.broadcast %cst_67 : f32 to vector<16x1xf32>
    %198 = arith.divf %196, %197 : vector<16x1xf32>
    %cst_68 = arith.constant 9.99999996E-13 : f32
    %199 = vector.broadcast %cst_68 : f32 to vector<16x1xf32>
    %200 = arith.addf %198, %199 : vector<16x1xf32>
    %201 = math.rsqrt %200 : vector<16x1xf32>
    %202 = vector.broadcast %201 : vector<16x1xf32> to vector<16x32xf32>
    %203 = arith.mulf %193, %202 : vector<16x32xf32>
    %c80 = arith.constant 80 : index
    %c0_69 = arith.constant 0 : index
    %204 = vector.load %arg3[%c80, %c0_69] : memref<112x128xf32, #tpu.memory_space<vmem>>, vector<1x32xf32>
    %205 = vector.broadcast %204 : vector<1x32xf32> to vector<16x32xf32>
    %206 = arith.mulf %203, %205 : vector<16x32xf32>
    %c88 = arith.constant 88 : index
    %c0_70 = arith.constant 0 : index
    %207 = vector.load %arg3[%c88, %c0_70] : memref<112x128xf32, #tpu.memory_space<vmem>>, vector<1x32xf32>
    %208 = vector.broadcast %207 : vector<1x32xf32> to vector<16x32xf32>
    %209 = arith.addf %206, %208 : vector<16x32xf32>
    %210 = vector.extract_strided_slice %209 {offsets = [0, 0], sizes = [1, 32], strides = [1, 1]} : vector<16x32xf32> to vector<1x32xf32>
    %211 = vector.extract_strided_slice %209 {offsets = [8, 0], sizes = [1, 32], strides = [1, 1]} : vector<16x32xf32> to vector<1x32xf32>
    %212 = tpu.concatenate %210, %211 in 0 : vector<1x32xf32>, vector<1x32xf32> -> vector<2x32xf32>
    %213 = arith.truncf %212 : vector<2x32xf32> to vector<2x32xbf16>
    %cst_71 = arith.constant dense<0.000000e+00> : vector<2x32xf32>
    %214 = tpu.matmul %213, %6, %cst_71 {dimension_numbers = #tpu.dot_dimension_numbers<[1], [0], [0], [1], [0, 0, 1, 1], [], []>} : vector<2x32xbf16>, vector<32x32xbf16>, vector<2x32xf32> -> vector<2x32xf32>
    %c96_72 = arith.constant 96 : index
    %c0_73 = arith.constant 0 : index
    %215 = vector.load %arg3[%c96_72, %c0_73] : memref<112x128xf32, #tpu.memory_space<vmem>>, vector<1x32xf32>
    %216 = vector.broadcast %215 : vector<1x32xf32> to vector<2x32xf32>
    %217 = arith.addf %214, %216 : vector<2x32xf32>
    %218 = math.tanh %217 : vector<2x32xf32>
    %219 = arith.truncf %218 : vector<2x32xf32> to vector<2x32xbf16>
    %cst_74 = arith.constant dense<0.000000e+00> : vector<2x128xf32>
    %220 = tpu.matmul %219, %7, %cst_74 {dimension_numbers = #tpu.dot_dimension_numbers<[1], [0], [0], [1], [0, 0, 1, 1], [], []>} : vector<2x32xbf16>, vector<32x128xbf16>, vector<2x128xf32> -> vector<2x128xf32>
    %c104 = arith.constant 104 : index
    %c0_75 = arith.constant 0 : index
    %221 = vector.load %arg3[%c104, %c0_75] : memref<112x128xf32, #tpu.memory_space<vmem>>, vector<1x128xf32>
    %222 = vector.broadcast %221 : vector<1x128xf32> to vector<2x128xf32>
    %223 = arith.addf %220, %222 : vector<2x128xf32>
    %c0_76 = arith.constant 0 : index
    %c0_77 = arith.constant 0 : index
    %224 = vector.load %arg4[%c0_76, %c0_77] : memref<2x128xf32, #tpu.memory_space<vmem>>, vector<2x128xf32>
    tpu.vector_store %arg4[%c0_76, %c0_77], %223 {strides = array<i32>} : memref<2x128xf32, #tpu.memory_space<vmem>>, vector<2x128xf32>,
    return
  }
}

</mosaic_0001>

<llo_original>
// kernel: bert_classifier_forward.1
$region0: #{bert_classifier_forward.1}
  #allocation0 [shape = 'u32[]', space=smem, size = 0x4, offset = 0x4, fixed_abs, tag = 'smem constant byte address 0x4 - core index']
  #allocation1 [shape = 'u32[144,128]{1,0:T(1,128)}', space=vmem, size = 0x12000, scoped, tag = 'internal scratch']
  %s0 = inlined_call_operand.vmem [shape: f32[16,32], index: 0, kind: input, shape index: {}]
  %s1 = inlined_call_operand.vmem [shape: f32[16,16], index: 1, kind: input, shape index: {}]
  %s2 = inlined_call_operand.vmem [shape: bf16[352,128], index: 2, kind: input, shape index: {}]
  %s3 = inlined_call_operand.vmem [shape: f32[112,128], index: 3, kind: input, shape index: {}]
  %s4 = inlined_call_operand.hbm [shape: f32[2,128], index: 4, kind: output, shape index: {}]
  %s5 = sld [smem:[#allocation0]]
  $region26: #{bert_classifier_forward.1} parent=0
    _
  %s7 = ssub.s32 1, %s5
  %s8 = scalar_select 0, %s7, %s5
  $region1: #{bert_classifier_forward.1} parent=0
    #allocation2 [shape = 'u8[1024]{0}', space=vmem, size = 0x400, scoped, tag = 'output window, operand 0, single buffered']
    #allocation3 [shape = 's32[1]{0}', space=sflag, size = 0x4, scoped, tag = 'scoped memory for bert_classifier_forward.1']
    %9 = vsyncpa [#allocation3], 0
    // Predicated region
    $region2: #{bert_classifier_forward.1} parent=1 // pred_check
      _
    $region3: #{bert_classifier_forward.1} parent=1 // pred_check_branch
      %11 = sbr.rel (0) target = $region5
    $region4: #{bert_classifier_forward.1} parent=1 // pred_region
      _
    $region5: #{bert_classifier_forward.1} parent=1 // pred_fallthru
      _
    // Predicated region
    $region6: #{bert_classifier_forward.1} parent=1 // pred_check
      _
    $region7: #{bert_classifier_forward.1} parent=1 // pred_check_branch
      %13 = sbr.rel (0) target = $region9
    $region8: #{bert_classifier_forward.1} parent=1 // pred_region
      _
    $region9: #{bert_classifier_forward.1} parent=1 // pred_fallthru
      _
    // Predicated region
    $region10: #{bert_classifier_forward.1} parent=1 // pred_check
      _
    $region11: #{bert_classifier_forward.1} parent=1 // pred_check_branch
      %15 = sbr.rel (0) target = $region13
    $region12: #{bert_classifier_forward.1} parent=1 // pred_region
      _
    $region13: #{bert_classifier_forward.1} parent=1 // pred_fallthru
      _
    // Predicated region
    $region14: #{bert_classifier_forward.1} parent=1 // pred_check
      _
    $region15: #{bert_classifier_forward.1} parent=1 // pred_check_branch
      %17 = sbr.rel (0) target = $region17
    $region16: #{bert_classifier_forward.1} parent=1 // pred_region
      _
    $region17: #{bert_classifier_forward.1} parent=1 // pred_fallthru
      _
    %v19 = vld [vmem:[%s2] sm:$0xf]
    %v20 = vld [vmem:[%s2 + $0x4] sm:$0xf]
    %v21 = vld [vmem:[%s2 + $0x8] sm:$0xf]
    %v22 = vld [vmem:[%s2 + $0xc] sm:$0xf]
    %v23 = vld [vmem:[%s2 + $0x10] sm:$0xf]
    %v24 = vld [vmem:[%s2 + $0x14] sm:$0xf]
    %v25 = vld [vmem:[%s2 + $0x18] sm:$0xf]
    %v26 = vld [vmem:[%s2 + $0x1c] sm:$0xf]
    %v27 = vld [vmem:[%s2 + $0x20] sm:$0xf]
    %v28 = vld [vmem:[%s2 + $0x24] sm:$0xf]
    %v29 = vld [vmem:[%s2 + $0x28] sm:$0xf]
    %v30 = vld [vmem:[%s2 + $0x2c] sm:$0xf]
    %v31 = vld [vmem:[%s2 + $0x30] sm:$0xf]
    %v32 = vld [vmem:[%s2 + $0x34] sm:$0xf]
    %v33 = vld [vmem:[%s2 + $0x38] sm:$0xf]
    %v34 = vld [vmem:[%s2 + $0x3c] sm:$0xf]
    %v35 = vld [vmem:[%s2 + $0x40] sm:$0xf]
    %v36 = vld [vmem:[%s2 + $0x44] sm:$0xf]
    %v37 = vld [vmem:[%s2 + $0x48] sm:$0xf]
    %v38 = vld [vmem:[%s2 + $0x4c] sm:$0xf]
    %v39 = vld [vmem:[%s2 + $0x50] sm:$0xf]
    %v40 = vld [vmem:[%s2 + $0x54] sm:$0xf]
    %v41 = vld [vmem:[%s2 + $0x58] sm:$0xf]
    %v42 = vld [vmem:[%s2 + $0x5c] sm:$0xf]
    %v43 = vld [vmem:[%s2 + $0x60] sm:$0xf]
    %v44 = vld [vmem:[%s2 + $0x64] sm:$0xf]
    %v45 = vld [vmem:[%s2 + $0x68] sm:$0xf]
    %v46 = vld [vmem:[%s2 + $0x6c] sm:$0xf]
    %v47 = vld [vmem:[%s2 + $0x70] sm:$0xf]
    %v48 = vld [vmem:[%s2 + $0x74] sm:$0xf]
    %v49 = vld [vmem:[%s2 + $0x78] sm:$0xf]
    %v50 = vld [vmem:[%s2 + $0x7c] sm:$0xf]
    %v51 = vld [vmem:[%s2 + $0x80] sm:$0xf]
    %v52 = vld [vmem:[%s2 + $0x84] sm:$0xf]
    %v53 = vld [vmem:[%s2 + $0x88] sm:$0xf]
    %v54 = vld [vmem:[%s2 + $0x8c] sm:$0xf]
    %v55 = vld [vmem:[%s2 + $0x90] sm:$0xf]
    %v56 = vld [vmem:[%s2 + $0x94] sm:$0xf]
    %v57 = vld [vmem:[%s2 + $0x98] sm:$0xf]
    %v58 = vld [vmem:[%s2 + $0x9c] sm:$0xf]
    %v59 = vld [vmem:[%s2 + $0xa0] sm:$0xf]
    %v60 = vld [vmem:[%s2 + $0xa4] sm:$0xf]
    %v61 = vld [vmem:[%s2 + $0xa8] sm:$0xf]
    %v62 = vld [vmem:[%s2 + $0xac] sm:$0xf]
    %v63 = vld [vmem:[%s0] sm:$0xff]
    %v64 = vld [vmem:[%s0 + $0x8] sm:$0xff]
    %vm65 = vcmask 261120
    %v66 = vsel %vm65, %v63, 0.0
    %67 = vadd.xlane.f32.xlu0 %v66
    %v68 = vpop.xlane.xlu0 %67
    %v69 = vsel %vm65, %v64, 0.0
    %70 = vadd.xlane.f32.xlu0 %v69
    %v71 = vpop.xlane.xlu0 %70
    %v72 = vrcp.pop 32.0
    %v73 = vmul.f32 %v68, %v72
    %v74 = vmul.f32 %v71, %v72
    %v75 = vsub.f32 %v63, %v73
    %v76 = vsub.f32 %v64, %v74
    %v77 = vmul.f32 %v75, %v75
    %v78 = vmul.f32 %v76, %v76
    %v79 = vsel %vm65, %v77, 0.0
    %80 = vadd.xlane.f32.xlu0 %v79
    %v81 = vpop.xlane.xlu0 %80
    %v82 = vsel %vm65, %v78, 0.0
    %83 = vadd.xlane.f32.xlu0 %v82
    %v84 = vpop.xlane.xlu0 %83
    %v85 = vmul.f32 %v81, %v72
    %v86 = vmul.f32 %v84, %v72
    %v87 = vadd.f32 %v85, 1e-12
    %v88 = vadd.f32 %v86, 1e-12
    %v89 = vrsqrt.pop %v87
    %v90 = vrsqrt.pop %v88
    %v91 = vmul.f32 %v75, %v89
    %v92 = vmul.f32 %v76, %v90
    %v93 = vld [vmem:[%s3] sm:$0x1]
    %v94 = vlaneseq
    %v95 = vshrl.u32 %v94, 7
    %v96 = vsub.s32 0, %v95
    %v97 = vrot.slane %v93, %v96
    %v98 = vmul.f32 %v91, %v97
    %v99 = vmul.f32 %v92, %v97
    %v100 = vld [vmem:[%s3 + $0x8] sm:$0x1]
    %v101 = vlaneseq
    %v102 = vshrl.u32 %v101, 7
    %v103 = vsub.s32 0, %v102
    %v104 = vrot.slane %v100, %v103
    %v105 = vadd.f32 %v98, %v104
    %v106 = vadd.f32 %v99, %v104
    %v107 = vpack.c.bf16 %v106, %v105
    %v108 = vld [vmem:[%s3 + $0x10] sm:$0x1]
    %v109 = vlaneseq
    %v110 = vshrl.u32 %v109, 7
    %v111 = vsub.s32 0, %v110
    %v112 = vrot.slane %v108, %v111
    %v117 = vunpack.c.l.b16 %v19
    %v118 = vunpack.c.l.b16 %v20
    %v119 = vunpack.c.l.b16 %v21
    %v120 = vunpack.c.l.b16 %v22
    %v121 = vpack.c.b16 %v118, %v117
    %v122 = vpack.c.b16 %v120, %v119
    %v126 = vsel %vm65, %v107, 0
    %128 = vmatprep.subr.bf16.mxu0 0
    %129 = vmatpush1.bf16.msra.mxu0 0
    %130 = vmatprep.subr.bf16.mxu0 0
    %131 = vmatpush1.bf16.msra.mxu0 0
    %132 = vmatprep.subr.bf16.mxu0 0
    %133 = vmatpush1.bf16.msra.mxu0 0
    %134 = vmatprep.subr.bf16.mxu0 0
    %135 = vmatpush1.bf16.msra.mxu0 0
    %136 = vmatprep.subr.bf16.mxu0 0
    %137 = vmatpush1.bf16.msra.mxu0 0
    %138 = vmatprep.subr.bf16.mxu0 0
    %139 = vmatpush1.bf16.msra.mxu0 0
    %140 = vmatprep.subr.bf16.mxu0 0
    %141 = vmatpush1.bf16.msra.mxu0 %v122
    %142 = vmatprep.subr.bf16.mxu0 0
    %143 = vmatpush1.bf16.msra.mxu0 %v121
    %144 = vmatprep.subr.bf16.mxu0 0
    %145 = vmatpush2.bf16.msra.mxu0 0
    %146 = vmatprep.subr.bf16.mxu0 0
    %147 = vmatpush2.bf16.msra.mxu0 0
    %148 = vmatprep.subr.bf16.mxu0 0
    %149 = vmatpush2.bf16.msra.mxu0 0
    %150 = vmatprep.subr.bf16.mxu0 0
    %151 = vmatpush2.bf16.msra.mxu0 0
    %152 = vmatprep.subr.bf16.mxu0 0
    %153 = vmatpush2.bf16.msra.mxu0 0
    %154 = vmatprep.subr.bf16.mxu0 0
    %155 = vmatpush2.bf16.msra.mxu0 0
    %156 = vmatprep.subr.bf16.mxu0 0
    %157 = vmatpush2.bf16.msra.mxu0 0
    %158 = vmatprep.subr.bf16.mxu0 0
    %159 = vmatpush2.bf16.msra.mxu0 0
    %160 = vmatprep.mubr.bf16.mxu0 0
    %161 = vmatmul.mubr.bf16.gmra.mxu0 %v126
    %v162 = vpop.f32.mrf.mxu0
    %v163 = vadd.f32 %v112, %v162
    %v164 = vpop.f32.mrf.mxu0
    %v165 = vpop.f32.mrf.mxu0
    %v166 = vadd.f32 %v112, %v165
    %v167 = vpop.f32.mrf.mxu0
    %168 = vdwg.mxu0
    %v169 = vld [vmem:[%s3 + $0x18] sm:$0x1]
    %v170 = vlaneseq
    %v171 = vshrl.u32 %v170, 7
    %v172 = vsub.s32 0, %v171
    %v173 = vrot.slane %v169, %v172
    %v178 = vunpack.c.l.b16 %v23
    %v179 = vunpack.c.l.b16 %v24
    %v180 = vunpack.c.l.b16 %v25
    %v181 = vunpack.c.l.b16 %v26
    %v182 = vpack.c.b16 %v179, %v178
    %v183 = vpack.c.b16 %v181, %v180
    %186 = vmatprep.subr.bf16.mxu0 0
    %187 = vmatpush1.bf16.msra.mxu0 0
    %188 = vmatprep.subr.bf16.mxu0 0
    %189 = vmatpush1.bf16.msra.mxu0 0
    %190 = vmatprep.subr.bf16.mxu0 0
    %191 = vmatpush1.bf16.msra.mxu0 0
    %192 = vmatprep.subr.bf16.mxu0 0
    %193 = vmatpush1.bf16.msra.mxu0 0
    %194 = vmatprep.subr.bf16.mxu0 0
    %195 = vmatpush1.bf16.msra.mxu0 0
    %196 = vmatprep.subr.bf16.mxu0 0
    %197 = vmatpush1.bf16.msra.mxu0 0
    %198 = vmatprep.subr.bf16.mxu0 0
    %199 = vmatpush1.bf16.msra.mxu0 %v183
    %200 = vmatprep.subr.bf16.mxu0 0
    %201 = vmatpush1.bf16.msra.mxu0 %v182
    %202 = vmatprep.subr.bf16.mxu0 0
    %203 = vmatpush2.bf16.msra.mxu0 0
    %204 = vmatprep.subr.bf16.mxu0 0
    %205 = vmatpush2.bf16.msra.mxu0 0
    %206 = vmatprep.subr.bf16.mxu0 0
    %207 = vmatpush2.bf16.msra.mxu0 0
    %208 = vmatprep.subr.bf16.mxu0 0
    %209 = vmatpush2.bf16.msra.mxu0 0
    %210 = vmatprep.subr.bf16.mxu0 0
    %211 = vmatpush2.bf16.msra.mxu0 0
    %212 = vmatprep.subr.bf16.mxu0 0
    %213 = vmatpush2.bf16.msra.mxu0 0
    %214 = vmatprep.subr.bf16.mxu0 0
    %215 = vmatpush2.bf16.msra.mxu0 0
    %216 = vmatprep.subr.bf16.mxu0 0
    %217 = vmatpush2.bf16.msra.mxu0 0
    %218 = vmatprep.mubr.bf16.mxu0 0
    %219 = vmatmul.mubr.bf16.gmra.mxu0 %v126
    %v220 = vpop.f32.mrf.mxu0
    %v221 = vadd.f32 %v173, %v220
    %v222 = vpop.f32.mrf.mxu0
    %v223 = vpop.f32.mrf.mxu0
    %v224 = vadd.f32 %v173, %v223
    %v225 = vpop.f32.mrf.mxu0
    %226 = vdwg.mxu0
    %v227 = vld [vmem:[%s3 + $0x20] sm:$0x1]
    %v228 = vlaneseq
    %v229 = vshrl.u32 %v228, 7
    %v230 = vsub.s32 0, %v229
    %v231 = vrot.slane %v227, %v230
    %v236 = vunpack.c.l.b16 %v27
    %v237 = vunpack.c.l.b16 %v28
    %v238 = vunpack.c.l.b16 %v29
    %v239 = vunpack.c.l.b16 %v30
    %v240 = vpack.c.b16 %v237, %v236
    %v241 = vpack.c.b16 %v239, %v238
    %244 = vmatprep.subr.bf16.mxu0 0
    %245 = vmatpush1.bf16.msra.mxu0 0
    %246 = vmatprep.subr.bf16.mxu0 0
    %247 = vmatpush1.bf16.msra.mxu0 0
    %248 = vmatprep.subr.bf16.mxu0 0
    %249 = vmatpush1.bf16.msra.mxu0 0
    %250 = vmatprep.subr.bf16.mxu0 0
    %251 = vmatpush1.bf16.msra.mxu0 0
    %252 = vmatprep.subr.bf16.mxu0 0
    %253 = vmatpush1.bf16.msra.mxu0 0
    %254 = vmatprep.subr.bf16.mxu0 0
    %255 = vmatpush1.bf16.msra.mxu0 0
    %256 = vmatprep.subr.bf16.mxu0 0
    %257 = vmatpush1.bf16.msra.mxu0 %v241
    %258 = vmatprep.subr.bf16.mxu0 0
    %259 = vmatpush1.bf16.msra.mxu0 %v240
    %260 = vmatprep.subr.bf16.mxu0 0
    %261 = vmatpush2.bf16.msra.mxu0 0
    %262 = vmatprep.subr.bf16.mxu0 0
    %263 = vmatpush2.bf16.msra.mxu0 0
    %264 = vmatprep.subr.bf16.mxu0 0
    %265 = vmatpush2.bf16.msra.mxu0 0
    %266 = vmatprep.subr.bf16.mxu0 0
    %267 = vmatpush2.bf16.msra.mxu0 0
    %268 = vmatprep.subr.bf16.mxu0 0
    %269 = vmatpush2.bf16.msra.mxu0 0
    %270 = vmatprep.subr.bf16.mxu0 0
    %271 = vmatpush2.bf16.msra.mxu0 0
    %272 = vmatprep.subr.bf16.mxu0 0
    %273 = vmatpush2.bf16.msra.mxu0 0
    %274 = vmatprep.subr.bf16.mxu0 0
    %275 = vmatpush2.bf16.msra.mxu0 0
    %276 = vmatprep.mubr.bf16.mxu0 0
    %277 = vmatmul.mubr.bf16.gmra.mxu0 %v126
    %v278 = vpop.f32.mrf.mxu0
    %v279 = vadd.f32 %v231, %v278
    %v280 = vpop.f32.mrf.mxu0
    %v281 = vpop.f32.mrf.mxu0
    %v282 = vadd.f32 %v231, %v281
    %v283 = vpop.f32.mrf.mxu0
    %284 = vdwg.mxu0
    %v285 = vld [vmem:[%s1] sm:$0xff]
    %v286 = vld [vmem:[%s1 + $0x8] sm:$0xff]
    %v287 = vpack.c.bf16 %v166, %v163
    %v288 = vpack.c.bf16 %v224, %v221
    %v289 = vpack.c.bf16 %v282, %v279
    %vm290 = vcmask 64512
    %v292 = vsel %vm290, %v287, 0
    %v295 = vsel %vm290, %v288, 0
    %297 = vmatprep.subr.bf16.mxu0 0
    %298 = vmatpush1.bf16.xpose.msra.mxu0 0
    %299 = vmatprep.subr.bf16.mxu0 0
    %300 = vmatpush1.bf16.xpose.msra.mxu0 0
    %301 = vmatprep.subr.bf16.mxu0 0
    %302 = vmatpush1.bf16.xpose.msra.mxu0 0
    %303 = vmatprep.subr.bf16.mxu0 0
    %304 = vmatpush1.bf16.xpose.msra.mxu0 0
    %305 = vmatprep.subr.bf16.mxu0 0
    %306 = vmatpush1.bf16.xpose.msra.mxu0 0
    %307 = vmatprep.subr.bf16.mxu0 0
    %308 = vmatpush1.bf16.xpose.msra.mxu0 0
    %309 = vmatprep.subr.bf16.mxu0 0
    %310 = vmatpush1.bf16.xpose.msra.mxu0 0
    %311 = vmatprep.subr.bf16.mxu0 0
    %312 = vmatpush1.bf16.xpose.msra.mxu0 %v295
    %313 = vmatprep.subr.bf16.mxu0 0
    %314 = vmatpush2.bf16.xpose.msra.mxu0 0
    %315 = vmatprep.subr.bf16.mxu0 0
    %316 = vmatpush2.bf16.xpose.msra.mxu0 0
    %317 = vmatprep.subr.bf16.mxu0 0
    %318 = vmatpush2.bf16.xpose.msra.mxu0 0
    %319 = vmatprep.subr.bf16.mxu0 0
    %320 = vmatpush2.bf16.xpose.msra.mxu0 0
    %321 = vmatprep.subr.bf16.mxu0 0
    %322 = vmatpush2.bf16.xpose.msra.mxu0 0
    %323 = vmatprep.subr.bf16.mxu0 0
    %324 = vmatpush2.bf16.xpose.msra.mxu0 0
    %325 = vmatprep.subr.bf16.mxu0 0
    %326 = vmatpush2.bf16.xpose.msra.mxu0 0
    %327 = vmatprep.subr.bf16.mxu0 0
    %328 = vmatpush2.bf16.xpose.msra.mxu0 0
    %329 = vmatprep.mubr.bf16.mxu0 0
    %330 = vmatmul.mubr.bf16.gmra.mxu0 %v292
    %v331 = vpop.f32.mrf.mxu0
    %v332 = vadd.f32 0.0, %v331
    %v333 = vpop.f32.mrf.mxu0
    %v334 = vpop.f32.mrf.mxu0
    %v335 = vadd.f32 0.0, %v334
    %v336 = vpop.f32.mrf.mxu0
    %337 = vdwg.mxu0
    %v338 = vmul.f32 %v332, 0.35355338
    %v339 = vmul.f32 %v335, 0.35355338
    %v340 = vadd.f32 %v338, %v285
    %v341 = vadd.f32 %v339, %v286
    %vm342 = vcmask 130048
    %v343 = vsel %vm342, %v340, -inf
    %344 = vmax.xlane.f32.xlu0 %v343
    %v345 = vpop.xlane.xlu0 %344
    %v346 = vsel %vm342, %v341, -inf
    %347 = vmax.xlane.f32.xlu0 %v346
    %v348 = vpop.xlane.xlu0 %347
    %v349 = vsub.f32 %v340, %v345
    %v350 = vsub.f32 %v341, %v348
    %v351 = vmul.f32 %v349, 1.442695
    %v352 = vpow.pop %v351
    %v353 = vmul.f32 %v350, 1.442695
    %v354 = vpow.pop %v353
    %v355 = vsel %vm342, %v352, 0.0
    %356 = vadd.xlane.f32.xlu0 %v355
    %v357 = vpop.xlane.xlu0 %356
    %v358 = vsel %vm342, %v354, 0.0
    %359 = vadd.xlane.f32.xlu0 %v358
    %v360 = vpop.xlane.xlu0 %359
    %v361 = vrcp.pop %v357
    %v362 = vrcp.pop %v360
    %v363 = vmul.f32 %v352, %v361
    %v364 = vmul.f32 %v354, %v362
    %v365 = vpack.c.bf16 %v364, %v363
    %v367 = vsel %vm342, %v365, 0
    %369 = vmatprep.subr.bf16.mxu0 0
    %370 = vmatpush1.bf16.msra.mxu0 0
    %371 = vmatprep.subr.bf16.mxu0 0
    %372 = vmatpush1.bf16.msra.mxu0 0
    %373 = vmatprep.subr.bf16.mxu0 0
    %374 = vmatpush1.bf16.msra.mxu0 0
    %375 = vmatprep.subr.bf16.mxu0 0
    %376 = vmatpush1.bf16.msra.mxu0 0
    %377 = vmatprep.subr.bf16.mxu0 0
    %378 = vmatpush1.bf16.msra.mxu0 0
    %379 = vmatprep.subr.bf16.mxu0 0
    %380 = vmatpush1.bf16.msra.mxu0 0
    %381 = vmatprep.subr.bf16.mxu0 0
    %382 = vmatpush1.bf16.msra.mxu0 0
    %383 = vmatprep.subr.bf16.mxu0 0
    %384 = vmatpush1.bf16.msra.mxu0 %v289
    %385 = vmatprep.subr.bf16.mxu0 0
    %386 = vmatpush2.bf16.msra.mxu0 0
    %387 = vmatprep.subr.bf16.mxu0 0
    %388 = vmatpush2.bf16.msra.mxu0 0
    %389 = vmatprep.subr.bf16.mxu0 0
    %390 = vmatpush2.bf16.msra.mxu0 0
    %391 = vmatprep.subr.bf16.mxu0 0
    %392 = vmatpush2.bf16.msra.mxu0 0
    %393 = vmatprep.subr.bf16.mxu0 0
    %394 = vmatpush2.bf16.msra.mxu0 0
    %395 = vmatprep.subr.bf16.mxu0 0
    %396 = vmatpush2.bf16.msra.mxu0 0
    %397 = vmatprep.subr.bf16.mxu0 0
    %398 = vmatpush2.bf16.msra.mxu0 0
    %399 = vmatprep.subr.bf16.mxu0 0
    %400 = vmatpush2.bf16.msra.mxu0 0
    %401 = vmatprep.mubr.bf16.mxu0 0
    %402 = vmatmul.mubr.bf16.gmra.mxu0 %v367
    %v403 = vpop.f32.mrf.mxu0
    %v404 = vadd.f32 0.0, %v403
    %v405 = vpop.f32.mrf.mxu0
    %v406 = vpop.f32.mrf.mxu0
    %v407 = vadd.f32 0.0, %v406
    %v408 = vpop.f32.mrf.mxu0
    %409 = vdwg.mxu0
    %411 = vrot.lane.b32.xlu0 %v287, 120
    %v412 = vpop.permute.xlu0 %411
    %414 = vrot.lane.b32.xlu0 %v288, 120
    %v415 = vpop.permute.xlu0 %414
    %v417 = vsel %vm290, %v412, 0
    %v420 = vsel %vm290, %v415, 0
    %422 = vmatprep.subr.bf16.mxu0 0
    %423 = vmatpush1.bf16.xpose.msra.mxu0 0
    %424 = vmatprep.subr.bf16.mxu0 0
    %425 = vmatpush1.bf16.xpose.msra.mxu0 0
    %426 = vmatprep.subr.bf16.mxu0 0
    %427 = vmatpush1.bf16.xpose.msra.mxu0 0
    %428 = vmatprep.subr.bf16.mxu0 0
    %429 = vmatpush1.bf16.xpose.msra.mxu0 0
    %430 = vmatprep.subr.bf16.mxu0 0
    %431 = vmatpush1.bf16.xpose.msra.mxu0 0
    %432 = vmatprep.subr.bf16.mxu0 0
    %433 = vmatpush1.bf16.xpose.msra.mxu0 0
    %434 = vmatprep.subr.bf16.mxu0 0
    %435 = vmatpush1.bf16.xpose.msra.mxu0 0
    %436 = vmatprep.subr.bf16.mxu0 0
    %437 = vmatpush1.bf16.xpose.msra.mxu0 %v420
    %438 = vmatprep.subr.bf16.mxu0 0
    %439 = vmatpush2.bf16.xpose.msra.mxu0 0
    %440 = vmatprep.subr.bf16.mxu0 0
    %441 = vmatpush2.bf16.xpose.msra.mxu0 0
    %442 = vmatprep.subr.bf16.mxu0 0
    %443 = vmatpush2.bf16.xpose.msra.mxu0 0
    %444 = vmatprep.subr.bf16.mxu0 0
    %445 = vmatpush2.bf16.xpose.msra.mxu0 0
    %446 = vmatprep.subr.bf16.mxu0 0
    %447 = vmatpush2.bf16.xpose.msra.mxu0 0
    %448 = vmatprep.subr.bf16.mxu0 0
    %449 = vmatpush2.bf16.xpose.msra.mxu0 0
    %450 = vmatprep.subr.bf16.mxu0 0
    %451 = vmatpush2.bf16.xpose.msra.mxu0 0
    %452 = vmatprep.subr.bf16.mxu0 0
    %453 = vmatpush2.bf16.xpose.msra.mxu0 0
    %454 = vmatprep.mubr.bf16.mxu0 0
    %455 = vmatmul.mubr.bf16.gmra.mxu0 %v417
    %v456 = vpop.f32.mrf.mxu0
    %v457 = vadd.f32 0.0, %v456
    %v458 = vpop.f32.mrf.mxu0
    %v459 = vpop.f32.mrf.mxu0
    %v460 = vadd.f32 0.0, %v459
    %v461 = vpop.f32.mrf.mxu0
    %462 = vdwg.mxu0
    %v463 = vmul.f32 %v457, 0.35355338
    %v464 = vmul.f32 %v460, 0.35355338
    %v465 = vadd.f32 %v463, %v285
    %v466 = vadd.f32 %v464, %v286
    %v467 = vsel %vm342, %v465, -inf
    %468 = vmax.xlane.f32.xlu0 %v467
    %v469 = vpop.xlane.xlu0 %468
    %v470 = vsel %vm342, %v466, -inf
    %471 = vmax.xlane.f32.xlu0 %v470
    %v472 = vpop.xlane.xlu0 %471
    %v473 = vsub.f32 %v465, %v469
    %v474 = vsub.f32 %v466, %v472
    %v475 = vmul.f32 %v473, 1.442695
    %v476 = vpow.pop %v475
    %v477 = vmul.f32 %v474, 1.442695
    %v478 = vpow.pop %v477
    %v479 = vsel %vm342, %v476, 0.0
    %480 = vadd.xlane.f32.xlu0 %v479
    %v481 = vpop.xlane.xlu0 %480
    %v482 = vsel %vm342, %v478, 0.0
    %483 = vadd.xlane.f32.xlu0 %v482
    %v484 = vpop.xlane.xlu0 %483
    %v485 = vrcp.pop %v481
    %v486 = vrcp.pop %v484
    %v487 = vmul.f32 %v476, %v485
    %v488 = vmul.f32 %v478, %v486
    %v489 = vpack.c.bf16 %v488, %v487
    %491 = vrot.lane.b32.xlu0 %v289, 120
    %v492 = vpop.permute.xlu0 %491
    %v495 = vsel %vm342, %v489, 0
    %497 = vmatprep.subr.bf16.mxu0 0
    %498 = vmatpush1.bf16.msra.mxu0 0
    %499 = vmatprep.subr.bf16.mxu0 0
    %500 = vmatpush1.bf16.msra.mxu0 0
    %501 = vmatprep.subr.bf16.mxu0 0
    %502 = vmatpush1.bf16.msra.mxu0 0
    %503 = vmatprep.subr.bf16.mxu0 0
    %504 = vmatpush1.bf16.msra.mxu0 0
    %505 = vmatprep.subr.bf16.mxu0 0
    %506 = vmatpush1.bf16.msra.mxu0 0
    %507 = vmatprep.subr.bf16.mxu0 0
    %508 = vmatpush1.bf16.msra.mxu0 0
    %509 = vmatprep.subr.bf16.mxu0 0
    %510 = vmatpush1.bf16.msra.mxu0 0
    %511 = vmatprep.subr.bf16.mxu0 0
    %512 = vmatpush1.bf16.msra.mxu0 %v492
    %513 = vmatprep.subr.bf16.mxu0 0
    %514 = vmatpush2.bf16.msra.mxu0 0
    %515 = vmatprep.subr.bf16.mxu0 0
    %516 = vmatpush2.bf16.msra.mxu0 0
    %517 = vmatprep.subr.bf16.mxu0 0
    %518 = vmatpush2.bf16.msra.mxu0 0
    %519 = vmatprep.subr.bf16.mxu0 0
    %520 = vmatpush2.bf16.msra.mxu0 0
    %521 = vmatprep.subr.bf16.mxu0 0
    %522 = vmatpush2.bf16.msra.mxu0 0
    %523 = vmatprep.subr.bf16.mxu0 0
    %524 = vmatpush2.bf16.msra.mxu0 0
    %525 = vmatprep.subr.bf16.mxu0 0
    %526 = vmatpush2.bf16.msra.mxu0 0
    %527 = vmatprep.subr.bf16.mxu0 0
    %528 = vmatpush2.bf16.msra.mxu0 0
    %529 = vmatprep.mubr.bf16.mxu0 0
    %530 = vmatmul.mubr.bf16.gmra.mxu0 %v495
    %v531 = vpop.f32.mrf.mxu0
    %v532 = vadd.f32 0.0, %v531
    %v533 = vpop.f32.mrf.mxu0
    %v534 = vpop.f32.mrf.mxu0
    %v535 = vadd.f32 0.0, %v534
    %v536 = vpop.f32.mrf.mxu0
    %537 = vdwg.mxu0
    %538 = vrot.lane.b32.xlu0 %v287, 112
    %v539 = vpop.permute.xlu0 %538
    %540 = vrot.lane.b32.xlu0 %v288, 112
    %v541 = vpop.permute.xlu0 %540
    %v543 = vsel %vm290, %v539, 0
    %v546 = vsel %vm290, %v541, 0
    %548 = vmatprep.subr.bf16.mxu0 0
    %549 = vmatpush1.bf16.xpose.msra.mxu0 0
    %550 = vmatprep.subr.bf16.mxu0 0
    %551 = vmatpush1.bf16.xpose.msra.mxu0 0
    %552 = vmatprep.subr.bf16.mxu0 0
    %553 = vmatpush1.bf16.xpose.msra.mxu0 0
    %554 = vmatprep.subr.bf16.mxu0 0
    %555 = vmatpush1.bf16.xpose.msra.mxu0 0
    %556 = vmatprep.subr.bf16.mxu0 0
    %557 = vmatpush1.bf16.xpose.msra.mxu0 0
    %558 = vmatprep.subr.bf16.mxu0 0
    %559 = vmatpush1.bf16.xpose.msra.mxu0 0
    %560 = vmatprep.subr.bf16.mxu0 0
    %561 = vmatpush1.bf16.xpose.msra.mxu0 0
    %562 = vmatprep.subr.bf16.mxu0 0
    %563 = vmatpush1.bf16.xpose.msra.mxu0 %v546
    %564 = vmatprep.subr.bf16.mxu0 0
    %565 = vmatpush2.bf16.xpose.msra.mxu0 0
    %566 = vmatprep.subr.bf16.mxu0 0
    %567 = vmatpush2.bf16.xpose.msra.mxu0 0
    %568 = vmatprep.subr.bf16.mxu0 0
    %569 = vmatpush2.bf16.xpose.msra.mxu0 0
    %570 = vmatprep.subr.bf16.mxu0 0
    %571 = vmatpush2.bf16.xpose.msra.mxu0 0
    %572 = vmatprep.subr.bf16.mxu0 0
    %573 = vmatpush2.bf16.xpose.msra.mxu0 0
    %574 = vmatprep.subr.bf16.mxu0 0
    %575 = vmatpush2.bf16.xpose.msra.mxu0 0
    %576 = vmatprep.subr.bf16.mxu0 0
    %577 = vmatpush2.bf16.xpose.msra.mxu0 0
    %578 = vmatprep.subr.bf16.mxu0 0
    %579 = vmatpush2.bf16.xpose.msra.mxu0 0
    %580 = vmatprep.mubr.bf16.mxu0 0
    %581 = vmatmul.mubr.bf16.gmra.mxu0 %v543
    %v582 = vpop.f32.mrf.mxu0
    %v583 = vadd.f32 0.0, %v582
    %v584 = vpop.f32.mrf.mxu0
    %v585 = vpop.f32.mrf.mxu0
    %v586 = vadd.f32 0.0, %v585
    %v587 = vpop.f32.mrf.mxu0
    %588 = vdwg.mxu0
    %v589 = vmul.f32 %v583, 0.35355338
    %v590 = vmul.f32 %v586, 0.35355338
    %v591 = vadd.f32 %v589, %v285
    %v592 = vadd.f32 %v590, %v286
    %v593 = vsel %vm342, %v591, -inf
    %594 = vmax.xlane.f32.xlu0 %v593
    %v595 = vpop.xlane.xlu0 %594
    %v596 = vsel %vm342, %v592, -inf
    %597 = vmax.xlane.f32.xlu0 %v596
    %v598 = vpop.xlane.xlu0 %597
    %v599 = vsub.f32 %v591, %v595
    %v600 = vsub.f32 %v592, %v598
    %v601 = vmul.f32 %v599, 1.442695
    %v602 = vpow.pop %v601
    %v603 = vmul.f32 %v600, 1.442695
    %v604 = vpow.pop %v603
    %v605 = vsel %vm342, %v602, 0.0
    %606 = vadd.xlane.f32.xlu0 %v605
    %v607 = vpop.xlane.xlu0 %606
    %v608 = vsel %vm342, %v604, 0.0
    %609 = vadd.xlane.f32.xlu0 %v608
    %v610 = vpop.xlane.xlu0 %609
    %v611 = vrcp.pop %v607
    %v612 = vrcp.pop %v610
    %v613 = vmul.f32 %v602, %v611
    %v614 = vmul.f32 %v604, %v612
    %v615 = vpack.c.bf16 %v614, %v613
    %616 = vrot.lane.b32.xlu0 %v289, 112
    %v617 = vpop.permute.xlu0 %616
    %v620 = vsel %vm342, %v615, 0
    %622 = vmatprep.subr.bf16.mxu0 0
    %623 = vmatpush1.bf16.msra.mxu0 0
    %624 = vmatprep.subr.bf16.mxu0 0
    %625 = vmatpush1.bf16.msra.mxu0 0
    %626 = vmatprep.subr.bf16.mxu0 0
    %627 = vmatpush1.bf16.msra.mxu0 0
    %628 = vmatprep.subr.bf16.mxu0 0
    %629 = vmatpush1.bf16.msra.mxu0 0
    %630 = vmatprep.subr.bf16.mxu0 0
    %631 = vmatpush1.bf16.msra.mxu0 0
    %632 = vmatprep.subr.bf16.mxu0 0
    %633 = vmatpush1.bf16.msra.mxu0 0
    %634 = vmatprep.subr.bf16.mxu0 0
    %635 = vmatpush1.bf16.msra.mxu0 0
    %636 = vmatprep.subr.bf16.mxu0 0
    %637 = vmatpush1.bf16.msra.mxu0 %v617
    %638 = vmatprep.subr.bf16.mxu0 0
    %639 = vmatpush2.bf16.msra.mxu0 0
    %640 = vmatprep.subr.bf16.mxu0 0
    %641 = vmatpush2.bf16.msra.mxu0 0
    %642 = vmatprep.subr.bf16.mxu0 0
    %643 = vmatpush2.bf16.msra.mxu0 0
    %644 = vmatprep.subr.bf16.mxu0 0
    %645 = vmatpush2.bf16.msra.mxu0 0
    %646 = vmatprep.subr.bf16.mxu0 0
    %647 = vmatpush2.bf16.msra.mxu0 0
    %648 = vmatprep.subr.bf16.mxu0 0
    %649 = vmatpush2.bf16.msra.mxu0 0
    %650 = vmatprep.subr.bf16.mxu0 0
    %651 = vmatpush2.bf16.msra.mxu0 0
    %652 = vmatprep.subr.bf16.mxu0 0
    %653 = vmatpush2.bf16.msra.mxu0 0
    %654 = vmatprep.mubr.bf16.mxu0 0
    %655 = vmatmul.mubr.bf16.gmra.mxu0 %v620
    %v656 = vpop.f32.mrf.mxu0
    %v657 = vadd.f32 0.0, %v656
    %v658 = vpop.f32.mrf.mxu0
    %v659 = vpop.f32.mrf.mxu0
    %v660 = vadd.f32 0.0, %v659
    %v661 = vpop.f32.mrf.mxu0
    %662 = vdwg.mxu0
    %663 = vrot.lane.b32.xlu0 %v287, 104
    %v664 = vpop.permute.xlu0 %663
    %665 = vrot.lane.b32.xlu0 %v288, 104
    %v666 = vpop.permute.xlu0 %665
    %v668 = vsel %vm290, %v664, 0
    %v671 = vsel %vm290, %v666, 0
    %673 = vmatprep.subr.bf16.mxu0 0
    %674 = vmatpush1.bf16.xpose.msra.mxu0 0
    %675 = vmatprep.subr.bf16.mxu0 0
    %676 = vmatpush1.bf16.xpose.msra.mxu0 0
    %677 = vmatprep.subr.bf16.mxu0 0
    %678 = vmatpush1.bf16.xpose.msra.mxu0 0
    %679 = vmatprep.subr.bf16.mxu0 0
    %680 = vmatpush1.bf16.xpose.msra.mxu0 0
    %681 = vmatprep.subr.bf16.mxu0 0
    %682 = vmatpush1.bf16.xpose.msra.mxu0 0
    %683 = vmatprep.subr.bf16.mxu0 0
    %684 = vmatpush1.bf16.xpose.msra.mxu0 0
    %685 = vmatprep.subr.bf16.mxu0 0
    %686 = vmatpush1.bf16.xpose.msra.mxu0 0
    %687 = vmatprep.subr.bf16.mxu0 0
    %688 = vmatpush1.bf16.xpose.msra.mxu0 %v671
    %689 = vmatprep.subr.bf16.mxu0 0
    %690 = vmatpush2.bf16.xpose.msra.mxu0 0
    %691 = vmatprep.subr.bf16.mxu0 0
    %692 = vmatpush2.bf16.xpose.msra.mxu0 0
    %693 = vmatprep.subr.bf16.mxu0 0
    %694 = vmatpush2.bf16.xpose.msra.mxu0 0
    %695 = vmatprep.subr.bf16.mxu0 0
    %696 = vmatpush2.bf16.xpose.msra.mxu0 0
    %697 = vmatprep.subr.bf16.mxu0 0
    %698 = vmatpush2.bf16.xpose.msra.mxu0 0
    %699 = vmatprep.subr.bf16.mxu0 0
    %700 = vmatpush2.bf16.xpose.msra.mxu0 0
    %701 = vmatprep.subr.bf16.mxu0 0
    %702 = vmatpush2.bf16.xpose.msra.mxu0 0
    %703 = vmatprep.subr.bf16.mxu0 0
    %704 = vmatpush2.bf16.xpose.msra.mxu0 0
    %705 = vmatprep.mubr.bf16.mxu0 0
    %706 = vmatmul.mubr.bf16.gmra.mxu0 %v668
    %v707 = vpop.f32.mrf.mxu0
    %v708 = vadd.f32 0.0, %v707
    %v709 = vpop.f32.mrf.mxu0
    %v710 = vpop.f32.mrf.mxu0
    %v711 = vadd.f32 0.0, %v710
    %v712 = vpop.f32.mrf.mxu0
    %713 = vdwg.mxu0
    %v714 = vmul.f32 %v708, 0.35355338
    %v715 = vmul.f32 %v711, 0.35355338
    %v716 = vadd.f32 %v714, %v285
    %v717 = vadd.f32 %v715, %v286
    %v718 = vsel %vm342, %v716, -inf
    %719 = vmax.xlane.f32.xlu0 %v718
    %v720 = vpop.xlane.xlu0 %719
    %v721 = vsel %vm342, %v717, -inf
    %722 = vmax.xlane.f32.xlu0 %v721
    %v723 = vpop.xlane.xlu0 %722
    %v724 = vsub.f32 %v716, %v720
    %v725 = vsub.f32 %v717, %v723
    %v726 = vmul.f32 %v724, 1.442695
    %v727 = vpow.pop %v726
    %v728 = vmul.f32 %v725, 1.442695
    %v729 = vpow.pop %v728
    %v730 = vsel %vm342, %v727, 0.0
    %731 = vadd.xlane.f32.xlu0 %v730
    %v732 = vpop.xlane.xlu0 %731
    %v733 = vsel %vm342, %v729, 0.0
    %734 = vadd.xlane.f32.xlu0 %v733
    %v735 = vpop.xlane.xlu0 %734
    %v736 = vrcp.pop %v732
    %v737 = vrcp.pop %v735
    %v738 = vmul.f32 %v727, %v736
    %v739 = vmul.f32 %v729, %v737
    %v740 = vpack.c.bf16 %v739, %v738
    %741 = vrot.lane.b32.xlu0 %v289, 104
    %v742 = vpop.permute.xlu0 %741
    %v745 = vsel %vm342, %v740, 0
    %747 = vmatprep.subr.bf16.mxu0 0
    %748 = vmatpush1.bf16.msra.mxu0 0
    %749 = vmatprep.subr.bf16.mxu0 0
    %750 = vmatpush1.bf16.msra.mxu0 0
    %751 = vmatprep.subr.bf16.mxu0 0
    %752 = vmatpush1.bf16.msra.mxu0 0
    %753 = vmatprep.subr.bf16.mxu0 0
    %754 = vmatpush1.bf16.msra.mxu0 0
    %755 = vmatprep.subr.bf16.mxu0 0
    %756 = vmatpush1.bf16.msra.mxu0 0
    %757 = vmatprep.subr.bf16.mxu0 0
    %758 = vmatpush1.bf16.msra.mxu0 0
    %759 = vmatprep.subr.bf16.mxu0 0
    %760 = vmatpush1.bf16.msra.mxu0 0
    %761 = vmatprep.subr.bf16.mxu0 0
    %762 = vmatpush1.bf16.msra.mxu0 %v742
    %763 = vmatprep.subr.bf16.mxu0 0
    %764 = vmatpush2.bf16.msra.mxu0 0
    %765 = vmatprep.subr.bf16.mxu0 0
    %766 = vmatpush2.bf16.msra.mxu0 0
    %767 = vmatprep.subr.bf16.mxu0 0
    %768 = vmatpush2.bf16.msra.mxu0 0
    %769 = vmatprep.subr.bf16.mxu0 0
    %770 = vmatpush2.bf16.msra.mxu0 0
    %771 = vmatprep.subr.bf16.mxu0 0
    %772 = vmatpush2.bf16.msra.mxu0 0
    %773 = vmatprep.subr.bf16.mxu0 0
    %774 = vmatpush2.bf16.msra.mxu0 0
    %775 = vmatprep.subr.bf16.mxu0 0
    %776 = vmatpush2.bf16.msra.mxu0 0
    %777 = vmatprep.subr.bf16.mxu0 0
    %778 = vmatpush2.bf16.msra.mxu0 0
    %779 = vmatprep.mubr.bf16.mxu0 0
    %780 = vmatmul.mubr.bf16.gmra.mxu0 %v745
    %v781 = vpop.f32.mrf.mxu0
    %v782 = vadd.f32 0.0, %v781
    %v783 = vpop.f32.mrf.mxu0
    %v784 = vpop.f32.mrf.mxu0
    %v785 = vadd.f32 0.0, %v784
    %v786 = vpop.f32.mrf.mxu0
    %787 = vdwg.mxu0
    %790 = vrot.lane.b32.xlu0 %v532, 8
    %v791 = vpop.permute.xlu0 %790
    %792 = vrot.lane.b32.xlu0 %v535, 8
    %v793 = vpop.permute.xlu0 %792
    %798 = vrot.lane.b32.xlu0 %v657, 16
    %v799 = vpop.permute.xlu0 %798
    %800 = vrot.lane.b32.xlu0 %v660, 16
    %v801 = vpop.permute.xlu0 %800
    %806 = vrot.lane.b32.xlu0 %v782, 24
    %v807 = vpop.permute.xlu0 %806
    %808 = vrot.lane.b32.xlu0 %v785, 24
    %v809 = vpop.permute.xlu0 %808
    %v812 = vsel %vm290, %v404, %v791
    %v813 = vsel %vm290, %v407, %v793
    %v814 = vsel %vm342, %v812, %v799
    %v815 = vsel %vm342, %v813, %v801
    %vm816 = vcmask 195584
    %v817 = vsel %vm816, %v814, %v807
    %v818 = vsel %vm816, %v815, %v809
    %v819 = vpack.c.bf16 %v818, %v817
    %v820 = vld [vmem:[%s3 + $0x28] sm:$0x1]
    %v821 = vlaneseq
    %v822 = vshrl.u32 %v821, 7
    %v823 = vsub.s32 0, %v822
    %v824 = vrot.slane %v820, %v823
    %v829 = vunpack.c.l.b16 %v31
    %v830 = vunpack.c.l.b16 %v32
    %v831 = vunpack.c.l.b16 %v33
    %v832 = vunpack.c.l.b16 %v34
    %v833 = vpack.c.b16 %v830, %v829
    %v834 = vpack.c.b16 %v832, %v831
    %v838 = vsel %vm65, %v819, 0
    %840 = vmatprep.subr.bf16.mxu0 0
    %841 = vmatpush1.bf16.msra.mxu0 0
    %842 = vmatprep.subr.bf16.mxu0 0
    %843 = vmatpush1.bf16.msra.mxu0 0
    %844 = vmatprep.subr.bf16.mxu0 0
    %845 = vmatpush1.bf16.msra.mxu0 0
    %846 = vmatprep.subr.bf16.mxu0 0
    %847 = vmatpush1.bf16.msra.mxu0 0
    %848 = vmatprep.subr.bf16.mxu0 0
    %849 = vmatpush1.bf16.msra.mxu0 0
    %850 = vmatprep.subr.bf16.mxu0 0
    %851 = vmatpush1.bf16.msra.mxu0 0
    %852 = vmatprep.subr.bf16.mxu0 0
    %853 = vmatpush1.bf16.msra.mxu0 %v834
    %854 = vmatprep.subr.bf16.mxu0 0
    %855 = vmatpush1.bf16.msra.mxu0 %v833
    %856 = vmatprep.subr.bf16.mxu0 0
    %857 = vmatpush2.bf16.msra.mxu0 0
    %858 = vmatprep.subr.bf16.mxu0 0
    %859 = vmatpush2.bf16.msra.mxu0 0
    %860 = vmatprep.subr.bf16.mxu0 0
    %861 = vmatpush2.bf16.msra.mxu0 0
    %862 = vmatprep.subr.bf16.mxu0 0
    %863 = vmatpush2.bf16.msra.mxu0 0
    %864 = vmatprep.subr.bf16.mxu0 0
    %865 = vmatpush2.bf16.msra.mxu0 0
    %866 = vmatprep.subr.bf16.mxu0 0
    %867 = vmatpush2.bf16.msra.mxu0 0
    %868 = vmatprep.subr.bf16.mxu0 0
    %869 = vmatpush2.bf16.msra.mxu0 0
    %870 = vmatprep.subr.bf16.mxu0 0
    %871 = vmatpush2.bf16.msra.mxu0 0
    %872 = vmatprep.mubr.bf16.mxu0 0
    %873 = vmatmul.mubr.bf16.gmra.mxu0 %v838
    %v874 = vpop.f32.mrf.mxu0
    %v875 = vadd.f32 %v824, %v874
    %v876 = vpop.f32.mrf.mxu0
    %v877 = vpop.f32.mrf.mxu0
    %v878 = vadd.f32 %v824, %v877
    %v879 = vpop.f32.mrf.mxu0
    %880 = vdwg.mxu0
    %v881 = vadd.f32 %v875, %v105
    %v882 = vadd.f32 %v878, %v106
    %v883 = vsel %vm65, %v881, 0.0
    %884 = vadd.xlane.f32.xlu0 %v883
    %v885 = vpop.xlane.xlu0 %884
    %v886 = vsel %vm65, %v882, 0.0
    %887 = vadd.xlane.f32.xlu0 %v886
    %v888 = vpop.xlane.xlu0 %887
    %v889 = vmul.f32 %v885, %v72
    %v890 = vmul.f32 %v888, %v72
    %v891 = vsub.f32 %v881, %v889
    %v892 = vsub.f32 %v882, %v890
    %v893 = vmul.f32 %v891, %v891
    %v894 = vmul.f32 %v892, %v892
    %v895 = vsel %vm65, %v893, 0.0
    %896 = vadd.xlane.f32.xlu0 %v895
    %v897 = vpop.xlane.xlu0 %896
    %v898 = vsel %vm65, %v894, 0.0
    %899 = vadd.xlane.f32.xlu0 %v898
    %v900 = vpop.xlane.xlu0 %899
    %v901 = vmul.f32 %v897, %v72
    %v902 = vmul.f32 %v900, %v72
    %v903 = vadd.f32 %v901, 1e-12
    %v904 = vadd.f32 %v902, 1e-12
    %v905 = vrsqrt.pop %v903
    %v906 = vrsqrt.pop %v904
    %v907 = vmul.f32 %v891, %v905
    %v908 = vmul.f32 %v892, %v906
    %v909 = vld [vmem:[%s3 + $0x30] sm:$0x1]
    %v910 = vlaneseq
    %v911 = vshrl.u32 %v910, 7
    %v912 = vsub.s32 0, %v911
    %v913 = vrot.slane %v909, %v912
    %v914 = vmul.f32 %v907, %v913
    %v915 = vmul.f32 %v908, %v913
    %v916 = vld [vmem:[%s3 + $0x38] sm:$0x1]
    %v917 = vlaneseq
    %v918 = vshrl.u32 %v917, 7
    %v919 = vsub.s32 0, %v918
    %v920 = vrot.slane %v916, %v919
    %v921 = vadd.f32 %v914, %v920
    %v922 = vadd.f32 %v915, %v920
    %v923 = vpack.c.bf16 %v922, %v921
    %v924 = vld [vmem:[%s3 + $0x40] sm:$0x1]
    %v925 = vlaneseq
    %v926 = vshrl.u32 %v925, 7
    %v927 = vsub.s32 0, %v926
    %v928 = vrot.slane %v924, %v927
    %v933 = vunpack.c.l.b16 %v35
    %v934 = vunpack.c.l.b16 %v36
    %v935 = vunpack.c.l.b16 %v37
    %v936 = vunpack.c.l.b16 %v38
    %v937 = vpack.c.b16 %v934, %v933
    %v938 = vpack.c.b16 %v936, %v935
    %v942 = vsel %vm65, %v923, 0
    %944 = vmatprep.subr.bf16.mxu0 0
    %945 = vmatpush1.bf16.msra.mxu0 0
    %946 = vmatprep.subr.bf16.mxu0 0
    %947 = vmatpush1.bf16.msra.mxu0 0
    %948 = vmatprep.subr.bf16.mxu0 0
    %949 = vmatpush1.bf16.msra.mxu0 0
    %950 = vmatprep.subr.bf16.mxu0 0
    %951 = vmatpush1.bf16.msra.mxu0 0
    %952 = vmatprep.subr.bf16.mxu0 0
    %953 = vmatpush1.bf16.msra.mxu0 0
    %954 = vmatprep.subr.bf16.mxu0 0
    %955 = vmatpush1.bf16.msra.mxu0 0
    %956 = vmatprep.subr.bf16.mxu0 0
    %957 = vmatpush1.bf16.msra.mxu0 %v938
    %958 = vmatprep.subr.bf16.mxu0 0
    %959 = vmatpush1.bf16.msra.mxu0 %v937
    %960 = vmatprep.subr.bf16.mxu0 0
    %961 = vmatpush2.bf16.msra.mxu0 0
    %962 = vmatprep.subr.bf16.mxu0 0
    %963 = vmatpush2.bf16.msra.mxu0 0
    %964 = vmatprep.subr.bf16.mxu0 0
    %965 = vmatpush2.bf16.msra.mxu0 0
    %966 = vmatprep.subr.bf16.mxu0 0
    %967 = vmatpush2.bf16.msra.mxu0 0
    %968 = vmatprep.subr.bf16.mxu0 0
    %969 = vmatpush2.bf16.msra.mxu0 0
    %970 = vmatprep.subr.bf16.mxu0 0
    %971 = vmatpush2.bf16.msra.mxu0 0
    %972 = vmatprep.subr.bf16.mxu0 0
    %973 = vmatpush2.bf16.msra.mxu0 0
    %974 = vmatprep.subr.bf16.mxu0 0
    %975 = vmatpush2.bf16.msra.mxu0 0
    %976 = vmatprep.mubr.bf16.mxu0 0
    %977 = vmatmul.mubr.bf16.gmra.mxu0 %v942
    %v978 = vpop.f32.mrf.mxu0
    %v979 = vadd.f32 %v928, %v978
    %v980 = vpop.f32.mrf.mxu0
    %v981 = vpop.f32.mrf.mxu0
    %v982 = vadd.f32 %v928, %v981
    %v983 = vpop.f32.mrf.mxu0
    %984 = vdwg.mxu0
    %v985 = vmul.f32 %v979, %v979
    %v986 = vmul.f32 %v982, %v982
    %v987 = vmul.f32 %v979, %v985
    %v988 = vmul.f32 %v982, %v986
    %v989 = vmul.f32 %v987, 0.044715
    %v990 = vmul.f32 %v988, 0.044715
    %v991 = vadd.f32 %v979, %v989
    %v992 = vadd.f32 %v982, %v990
    %v993 = vmul.f32 %v991, 0.7978846
    %v994 = vmul.f32 %v992, 0.7978846
    %v995 = vtanh.pop %v993
    %v996 = vtanh.pop %v994
    %v997 = vadd.f32 %v995, 1.0
    %v998 = vadd.f32 %v996, 1.0
    %v999 = vmul.f32 %v997, 0.5
    %v1000 = vmul.f32 %v998, 0.5
    %v1001 = vmul.f32 %v979, %v999
    %v1002 = vmul.f32 %v982, %v1000
    %v1003 = vpack.c.bf16 %v1002, %v1001
    %v1004 = vld [vmem:[%s3 + $0x48] sm:$0x1]
    %v1005 = vlaneseq
    %v1006 = vshrl.u32 %v1005, 7
    %v1007 = vsub.s32 0, %v1006
    %v1008 = vrot.slane %v1004, %v1007
    %v1025 = vunpack.c.l.b16 %v39
    %v1026 = vunpack.c.l.b16 %v40
    %v1027 = vunpack.c.l.b16 %v41
    %v1028 = vunpack.c.l.b16 %v42
    %v1029 = vunpack.c.l.b16 %v43
    %v1030 = vunpack.c.l.b16 %v44
    %v1031 = vunpack.c.l.b16 %v45
    %v1032 = vunpack.c.l.b16 %v46
    %v1033 = vunpack.c.l.b16 %v47
    %v1034 = vunpack.c.l.b16 %v48
    %v1035 = vunpack.c.l.b16 %v49
    %v1036 = vunpack.c.l.b16 %v50
    %v1037 = vunpack.c.l.b16 %v51
    %v1038 = vunpack.c.l.b16 %v52
    %v1039 = vunpack.c.l.b16 %v53
    %v1040 = vunpack.c.l.b16 %v54
    %v1041 = vpack.c.b16 %v1026, %v1025
    %v1042 = vpack.c.b16 %v1028, %v1027
    %v1043 = vpack.c.b16 %v1030, %v1029
    %v1044 = vpack.c.b16 %v1032, %v1031
    %v1045 = vpack.c.b16 %v1034, %v1033
    %v1046 = vpack.c.b16 %v1036, %v1035
    %v1047 = vpack.c.b16 %v1038, %v1037
    %v1048 = vpack.c.b16 %v1040, %v1039
    %1057 = vmatprep.subr.bf16.mxu0 0
    %1058 = vmatpush1.bf16.msra.mxu0 %v1048
    %1059 = vmatprep.subr.bf16.mxu0 0
    %1060 = vmatpush1.bf16.msra.mxu0 %v1047
    %1061 = vmatprep.subr.bf16.mxu0 0
    %1062 = vmatpush1.bf16.msra.mxu0 %v1046
    %1063 = vmatprep.subr.bf16.mxu0 0
    %1064 = vmatpush1.bf16.msra.mxu0 %v1045
    %1065 = vmatprep.subr.bf16.mxu0 0
    %1066 = vmatpush1.bf16.msra.mxu0 %v1044
    %1067 = vmatprep.subr.bf16.mxu0 0
    %1068 = vmatpush1.bf16.msra.mxu0 %v1043
    %1069 = vmatprep.subr.bf16.mxu0 0
    %1070 = vmatpush1.bf16.msra.mxu0 %v1042
    %1071 = vmatprep.subr.bf16.mxu0 0
    %1072 = vmatpush1.bf16.msra.mxu0 %v1041
    %1073 = vmatprep.subr.bf16.mxu0 0
    %1074 = vmatpush2.bf16.msra.mxu0 0
    %1075 = vmatprep.subr.bf16.mxu0 0
    %1076 = vmatpush2.bf16.msra.mxu0 0
    %1077 = vmatprep.subr.bf16.mxu0 0
    %1078 = vmatpush2.bf16.msra.mxu0 0
    %1079 = vmatprep.subr.bf16.mxu0 0
    %1080 = vmatpush2.bf16.msra.mxu0 0
    %1081 = vmatprep.subr.bf16.mxu0 0
    %1082 = vmatpush2.bf16.msra.mxu0 0
    %1083 = vmatprep.subr.bf16.mxu0 0
    %1084 = vmatpush2.bf16.msra.mxu0 0
    %1085 = vmatprep.subr.bf16.mxu0 0
    %1086 = vmatpush2.bf16.msra.mxu0 0
    %1087 = vmatprep.subr.bf16.mxu0 0
    %1088 = vmatpush2.bf16.msra.mxu0 0
    %1089 = vmatprep.mubr.bf16.mxu0 0
    %1090 = vmatmul.mubr.bf16.gmra.mxu0 %v1003
    %v1091 = vpop.f32.mrf.mxu0
    %v1092 = vadd.f32 %v1008, %v1091
    %v1093 = vpop.f32.mrf.mxu0
    %v1094 = vpop.f32.mrf.mxu0
    %v1095 = vadd.f32 %v1008, %v1094
    %v1096 = vpop.f32.mrf.mxu0
    %1097 = vdwg.mxu0
    %v1098 = vadd.f32 %v1092, %v921
    %v1099 = vadd.f32 %v1095, %v922
    %v1100 = vsel %vm65, %v1098, 0.0
    %1101 = vadd.xlane.f32.xlu0 %v1100
    %v1102 = vpop.xlane.xlu0 %1101
    %v1103 = vsel %vm65, %v1099, 0.0
    %1104 = vadd.xlane.f32.xlu0 %v1103
    %v1105 = vpop.xlane.xlu0 %1104
    %v1106 = vmul.f32 %v1102, %v72
    %v1107 = vmul.f32 %v1105, %v72
    %v1108 = vsub.f32 %v1098, %v1106
    %v1109 = vsub.f32 %v1099, %v1107
    %v1110 = vmul.f32 %v1108, %v1108
    %v1111 = vmul.f32 %v1109, %v1109
    %v1112 = vsel %vm65, %v1110, 0.0
    %1113 = vadd.xlane.f32.xlu0 %v1112
    %v1114 = vpop.xlane.xlu0 %1113
    %v1115 = vsel %vm65, %v1111, 0.0
    %1116 = vadd.xlane.f32.xlu0 %v1115
    %v1117 = vpop.xlane.xlu0 %1116
    %v1118 = vmul.f32 %v1114, %v72
    %v1119 = vmul.f32 %v1117, %v72
    %v1120 = vadd.f32 %v1118, 1e-12
    %v1121 = vadd.f32 %v1119, 1e-12
    %v1122 = vrsqrt.pop %v1120
    %v1123 = vrsqrt.pop %v1121
    %v1124 = vmul.f32 %v1108, %v1122
    %v1125 = vmul.f32 %v1109, %v1123
    %v1126 = vld [vmem:[%s3 + $0x50] sm:$0x1]
    %v1127 = vlaneseq
    %v1128 = vshrl.u32 %v1127, 7
    %v1129 = vsub.s32 0, %v1128
    %v1130 = vrot.slane %v1126, %v1129
    %v1131 = vmul.f32 %v1124, %v1130
    %v1132 = vmul.f32 %v1125, %v1130
    %v1133 = vld [vmem:[%s3 + $0x58] sm:$0x1]
    %v1134 = vlaneseq
    %v1135 = vshrl.u32 %v1134, 7
    %v1136 = vsub.s32 0, %v1135
    %v1137 = vrot.slane %v1133, %v1136
    %v1138 = vadd.f32 %v1131, %v1137
    %v1139 = vadd.f32 %v1132, %v1137
    %v1141 = vrot.slane %v1139, 7
    %vm1143 = vcmask 1040384
    %v1144 = vsel %vm1143, %v1138, %v1141
    %v1145 = vpack.c.bf16 %v1144, %v1144
    %v1146 = vld [vmem:[%s3 + $0x60] sm:$0x1]
    %v1147 = vlaneseq
    %v1148 = vshrl.u32 %v1147, 7
    %v1149 = vsub.s32 0, %v1148
    %v1150 = vrot.slane %v1146, %v1149
    %v1155 = vunpack.c.l.b16 %v55
    %v1156 = vunpack.c.l.b16 %v56
    %v1157 = vunpack.c.l.b16 %v57
    %v1158 = vunpack.c.l.b16 %v58
    %v1159 = vpack.c.b16 %v1156, %v1155
    %v1160 = vpack.c.b16 %v1158, %v1157
    %v1164 = vsel %vm65, %v1145, 0
    %1166 = vmatprep.subr.bf16.mxu0 0
    %1167 = vmatpush1.bf16.msra.mxu0 0
    %1168 = vmatprep.subr.bf16.mxu0 0
    %1169 = vmatpush1.bf16.msra.mxu0 0
    %1170 = vmatprep.subr.bf16.mxu0 0
    %1171 = vmatpush1.bf16.msra.mxu0 0
    %1172 = vmatprep.subr.bf16.mxu0 0
    %1173 = vmatpush1.bf16.msra.mxu0 0
    %1174 = vmatprep.subr.bf16.mxu0 0
    %1175 = vmatpush1.bf16.msra.mxu0 0
    %1176 = vmatprep.subr.bf16.mxu0 0
    %1177 = vmatpush1.bf16.msra.mxu0 0
    %1178 = vmatprep.subr.bf16.mxu0 0
    %1179 = vmatpush1.bf16.msra.mxu0 %v1160
    %1180 = vmatprep.subr.bf16.mxu0 0
    %1181 = vmatpush1.bf16.msra.mxu0 %v1159
    %1182 = vmatprep.subr.bf16.mxu0 0
    %1183 = vmatpush2.bf16.msra.mxu0 0
    %1184 = vmatprep.subr.bf16.mxu0 0
    %1185 = vmatpush2.bf16.msra.mxu0 0
    %1186 = vmatprep.subr.bf16.mxu0 0
    %1187 = vmatpush2.bf16.msra.mxu0 0
    %1188 = vmatprep.subr.bf16.mxu0 0
    %1189 = vmatpush2.bf16.msra.mxu0 0
    %1190 = vmatprep.subr.bf16.mxu0 0
    %1191 = vmatpush2.bf16.msra.mxu0 0
    %1192 = vmatprep.subr.bf16.mxu0 0
    %1193 = vmatpush2.bf16.msra.mxu0 0
    %1194 = vmatprep.subr.bf16.mxu0 0
    %1195 = vmatpush2.bf16.msra.mxu0 0
    %1196 = vmatprep.subr.bf16.mxu0 0
    %1197 = vmatpush2.bf16.msra.mxu0 0
    %1198 = vmatprep.mubr.bf16.mxu0 0
    %1199 = vmatmul.mubr.bf16.gmra.mxu0 %v1164
    %v1200 = vpop.f32.mrf.mxu0
    %v1201 = vadd.f32 %v1150, %v1200
    %v1202 = vpop.f32.mrf.mxu0
    %v1203 = vpop.f32.mrf.mxu0
    %v1204 = vpop.f32.mrf.mxu0
    %1205 = vdwg.mxu0
    %v1206 = vtanh.pop %v1201
    %v1207 = vpack.c.bf16 %v1206, %v1206
    %v1208 = vld [vmem:[%s3 + $0x68] sm:$0x1]
    %v1209 = vlaneseq
    %v1210 = vshrl.u32 %v1209, 7
    %v1211 = vsub.s32 0, %v1210
    %v1212 = vrot.slane %v1208, %v1211
    %v1217 = vunpack.c.l.b16 %v59
    %v1218 = vunpack.c.l.b16 %v60
    %v1219 = vunpack.c.l.b16 %v61
    %v1220 = vunpack.c.l.b16 %v62
    %v1221 = vpack.c.b16 %v1218, %v1217
    %v1222 = vpack.c.b16 %v1220, %v1219
    %v1226 = vsel %vm65, %v1207, 0
    %1228 = vmatprep.subr.bf16.mxu0 0
    %1229 = vmatpush1.bf16.msra.mxu0 0
    %1230 = vmatprep.subr.bf16.mxu0 0
    %1231 = vmatpush1.bf16.msra.mxu0 0
    %1232 = vmatprep.subr.bf16.mxu0 0
    %1233 = vmatpush1.bf16.msra.mxu0 0
    %1234 = vmatprep.subr.bf16.mxu0 0
    %1235 = vmatpush1.bf16.msra.mxu0 0
    %1236 = vmatprep.subr.bf16.mxu0 0
    %1237 = vmatpush1.bf16.msra.mxu0 0
    %1238 = vmatprep.subr.bf16.mxu0 0
    %1239 = vmatpush1.bf16.msra.mxu0 0
    %1240 = vmatprep.subr.bf16.mxu0 0
    %1241 = vmatpush1.bf16.msra.mxu0 %v1222
    %1242 = vmatprep.subr.bf16.mxu0 0
    %1243 = vmatpush1.bf16.msra.mxu0 %v1221
    %1244 = vmatprep.subr.bf16.mxu0 0
    %1245 = vmatpush2.bf16.msra.mxu0 0
    %1246 = vmatprep.subr.bf16.mxu0 0
    %1247 = vmatpush2.bf16.msra.mxu0 0
    %1248 = vmatprep.subr.bf16.mxu0 0
    %1249 = vmatpush2.bf16.msra.mxu0 0
    %1250 = vmatprep.subr.bf16.mxu0 0
    %1251 = vmatpush2.bf16.msra.mxu0 0
    %1252 = vmatprep.subr.bf16.mxu0 0
    %1253 = vmatpush2.bf16.msra.mxu0 0
    %1254 = vmatprep.subr.bf16.mxu0 0
    %1255 = vmatpush2.bf16.msra.mxu0 0
    %1256 = vmatprep.subr.bf16.mxu0 0
    %1257 = vmatpush2.bf16.msra.mxu0 0
    %1258 = vmatprep.subr.bf16.mxu0 0
    %1259 = vmatpush2.bf16.msra.mxu0 0
    %1260 = vmatprep.mubr.bf16.mxu0 0
    %1261 = vmatmul.mubr.bf16.gmra.mxu0 %v1226
    %v1262 = vpop.f32.mrf.mxu0
    %v1263 = vadd.f32 %v1212, %v1262
    %v1264 = vpop.f32.mrf.mxu0
    %v1265 = vpop.f32.mrf.mxu0
    %v1266 = vpop.f32.mrf.mxu0
    %1267 = vdwg.mxu0
    %1268 = vst [vmem:[#allocation2] sm:$0x3] %v1263
    // Predicated region
    $region18: #{bert_classifier_forward.1} parent=1 // pred_check
      _
    $region19: #{bert_classifier_forward.1} parent=1 // pred_check_branch
      %1270 = sbr.rel (0) target = $region21
    $region20: #{bert_classifier_forward.1} parent=1 // pred_region
      %s1272 = ssub.s32 32, 32
      %1273 = vsyncadd [#allocation3], %s1272
      %s1275 = sshll.u32 [#allocation2], 4
      %s1276 = int_to_ptr.vmem [resolvable:$true] %s1275
      %1278 = dma.vmem_to_hbm [thread:$0]  %s1276, 32, %s4, [#allocation3]
    $region21: #{bert_classifier_forward.1} parent=1 // pred_fallthru
      _
    // Predicated region
    $region22: #{bert_classifier_forward.1} parent=1 // pred_check
      _
    $region23: #{bert_classifier_forward.1} parent=1 // pred_check_branch
      %1280 = sbr.rel (0) target = $region25
    $region24: #{bert_classifier_forward.1} parent=1 // pred_region
      %1281 = dma.done [#allocation3], 32
    $region25: #{bert_classifier_forward.1} parent=1 // pred_fallthru
      _
    %1282 = vsyncpa [#allocation3], 1

</llo_original>
